<compile_context>
chip_gen: v7x
topology: tpu7x:2x2x1
jax: 0.10.0
libtpu: 0.0.40
codegen_flags: <defaults>
</compile_context>

<pallas_src>
import numpy as np
import jax
import jax.numpy as jnp
from jax import lax
from jax.experimental import pallas as pl
from jax.experimental.pallas import tpu as pltpu

EPS = 1e-5
COL0 = 8   # interior column offset inside the padded scratch (8-aligned stores)


# ----------------------------------------------------------------------------
# parameter plumbing (plain numpy / JAX glue, runs outside the kernel)
# ----------------------------------------------------------------------------
def _round_up(x, m):
    return ((x + m - 1) // m) * m


def _pick_div(total, cap):
    """Largest divisor of `total` that is <= cap (>= 1)."""
    cap = max(1, min(cap, total))
    for b in range(cap, 0, -1):
        if total % b == 0:
            return b
    return 1


def _fold_bn(gamma, beta, mean, var):
    gamma, beta, mean, var = map(np.asarray, (gamma, beta, mean, var))
    scale = gamma / np.sqrt(var + EPS)
    bias = beta - mean * scale
    return scale.astype(np.float32), bias.astype(np.float32)


def _expand_grouped_1x1(w, groups):
    """PyTorch grouped 1x1 conv weight (Cout, Cin/g, 1, 1) -> dense (Cin, Cout)."""
    w = np.asarray(w)
    cout, cin_pg = w.shape[0], w.shape[1]
    cout_pg = cout // groups
    cin = cin_pg * groups
    dense = np.zeros((cin, cout), dtype=np.float32)
    w2d = w[:, :, 0, 0]
    for g in range(groups):
        dense[g * cin_pg:(g + 1) * cin_pg, g * cout_pg:(g + 1) * cout_pg] = \
            w2d[g * cout_pg:(g + 1) * cout_pg, :].T
    return dense


def init_bottleneck_params(key, in_channels, out_channels, stride, num_groups,
                           group_conv1x1=True):
    mid = out_channels // 4
    c3_out = out_channels - in_channels if stride == 2 else out_channels
    g1 = num_groups if group_conv1x1 else 1
    ks = jax.random.split(key, 6)

    def bn_params(k, c):
        k1, k2, k3, k4 = jax.random.split(k, 4)
        return dict(gamma=jax.random.uniform(k1, (c,), minval=0.5, maxval=1.5),
                    beta=jax.random.normal(k2, (c,)) * 0.1,
                    mean=jax.random.normal(k3, (c,)) * 0.1,
                    var=jax.random.uniform(k4, (c,), minval=0.5, maxval=1.5))

    return dict(
        w1=jax.random.normal(ks[0], (mid, in_channels // g1, 1, 1), jnp.float32) * 0.2,
        w2=jax.random.normal(ks[1], (mid, 1, 3, 3), jnp.float32) * 0.2,
        w3=jax.random.normal(ks[2], (c3_out, mid // num_groups, 1, 1), jnp.float32) * 0.2,
        bn1=bn_params(ks[3], mid),
        bn2=bn_params(ks[4], mid),
        bn3=bn_params(ks[5], c3_out),
    )


# ----------------------------------------------------------------------------
# the fused Pallas kernel (one batch element per grid step)
# ----------------------------------------------------------------------------
def _make_bottleneck_kernel(H, W, CinP, CmidP, Cc3P, CP, stride):
    Ho = (H + 2 - 3) // stride + 1
    Wo = (W + 2 - 3) // stride + 1
    Hp = H + 2

    # Band sizes (rows per band):
    #   conv1/conv3 matmul bands: M = rows*width targeted at 256-512 (v6e/v7x
    #   MXU is 2x256^2; M=128 only half-fills it).
    #   depthwise / avgpool VPU bands: keep the accumulator around ~16 vregs.
    rb1 = _pick_div(H, max(1, 512 // W))
    rb3 = _pick_div(Ho, max(1, 512 // Wo))
    rb_dw = _pick_div(Ho, max(1, (16 * 1024) // (Wo * CmidP)))
    rb_pool = _pick_div(Ho, max(1, (16 * 1024) // (Wo * CinP)))

    def kernel(x_ref, w1_ref, b1_ref, w2_ref, w3_ref, b3_ref, out_ref,
               hpad_ref, h2_ref):
        f32 = jnp.float32
        bf16 = jnp.bfloat16

        # ---- zero only the 1-pixel halo of the padded scratch --------------
        zrow = jnp.zeros((1, 1, W + 2, CP), f32)
        hpad_ref[:, 0:1, COL0 - 1:COL0 + W + 1, :] = zrow
        hpad_ref[:, Hp - 1:Hp, COL0 - 1:COL0 + W + 1, :] = zrow
        zcol = jnp.zeros((1, H, 1, CP), f32)
        hpad_ref[:, 1:H + 1, COL0 - 1:COL0, :] = zcol
        hpad_ref[:, 1:H + 1, COL0 + W:COL0 + W + 1, :] = zcol

        # ---- stride-2 shortcut: copy x into its own lane slab (no WAR vs.
        #      conv1) and AvgPool2d(3, stride=2, padding=1) straight into the
        #      first 128-aligned output lane slab ----------------------------
        if stride == 2:
            for rb in range(H // rb1):
                r0 = rb * rb1
                hpad_ref[:, 1 + r0:1 + r0 + rb1, COL0:COL0 + W,
                         CmidP:CmidP + CinP] = x_ref[:, r0:r0 + rb1, :, :]
            # TODO(synk): v5e would prefer a one-time even/odd column
            # deinterleave over these strided sublane reads.
            for ob in range(Ho // rb_pool):
                o0 = ob * rb_pool
                pacc = None
                for dy in range(3):
                    for dx in range(3):
                        win = hpad_ref[:, pl.ds(2 * o0 + dy, rb_pool, 2),
                                       pl.ds(COL0 - 1 + dx, Wo, 2),
                                       CmidP:CmidP + CinP]
                        pacc = win if pacc is None else pacc + win
                out_ref[:, o0:o0 + rb_pool, :, 0:CinP] = \
                    jnp.maximum(pacc * (1.0 / 9.0), 0.0)

        # ---- conv1: grouped 1x1 as dense lane-padded bf16 MXU matmul -------
        #      (channel shuffle + bn1 scale folded into the weight columns)
        w1 = w1_ref[...]                      # (CinP, CmidP) bf16
        b1 = b1_ref[...]                      # (1, CmidP)    f32
        for rb in range(H // rb1):
            r0 = rb * rb1
            xb = x_ref[:, r0:r0 + rb1, :, :].reshape(rb1 * W, CinP).astype(bf16)
            h1 = jnp.dot(xb, w1, preferred_element_type=f32)
            h1 = jnp.maximum(h1 + b1, 0.0)
            hpad_ref[:, 1 + r0:1 + r0 + rb1, COL0:COL0 + W, 0:CmidP] = \
                h1.reshape(1, rb1, W, CmidP)

        # ---- 3x3 depthwise (stride s, pad 1), bn2 scale folded into the taps.
        #      Output staged through a small VMEM scratch so the conv3 matmul
        #      band can be larger than the VPU accumulator band. -------------
        w2 = w2_ref[...]                      # (9, CmidP) f32, s2-folded
        w2taps = [w2[k:k + 1, :].reshape(1, 1, 1, CmidP) for k in range(9)]  # hoisted
        for ob in range(Ho // rb_dw):
            o0 = ob * rb_dw
            acc = None
            for dy in range(3):
                for dx in range(3):
                    if stride == 1:
                        win = hpad_ref[:, o0 + dy:o0 + dy + rb_dw,
                                       COL0 - 1 + dx:COL0 - 1 + dx + Wo, 0:CmidP]
                    else:
                        win = hpad_ref[:, pl.ds(2 * o0 + dy, rb_dw, 2),
                                       pl.ds(COL0 - 1 + dx, Wo, 2), 0:CmidP]
                    t = win * w2taps[dy * 3 + dx]
                    acc = t if acc is None else acc + t
            h2_ref[:, o0:o0 + rb_dw, :, :] = acc

        # ---- conv3: 1x1 grouped as dense bf16 MXU matmul; bn2 bias and bn3
        #      folded into w3/b3.  Residual-add (stride 1) or concat-slab
        #      write (stride 2) + relu, all lane-dense. -----------------------
        w3 = w3_ref[...]                      # (CmidP, Cc3P) bf16
        b3 = b3_ref[...]                      # (1, Cc3P)     f32
        for cb in range(Ho // rb3):
            o0 = cb * rb3
            h2 = h2_ref[:, o0:o0 + rb3, :, :].reshape(rb3 * Wo, CmidP).astype(bf16)
            h3 = jnp.dot(h2, w3, preferred_element_type=f32) + b3
            h3 = h3.reshape(1, rb3, Wo, Cc3P)
            if stride == 1:
                xb = x_ref[:, o0:o0 + rb3, :, :]          # CinP == Cc3P here
                out_ref[:, o0:o0 + rb3, :, :] = jnp.maximum(xb + h3, 0.0)
            else:
                out_ref[:, o0:o0 + rb3, :, CinP:CinP + Cc3P] = jnp.maximum(h3, 0.0)

    return kernel, Ho, Wo


def bottleneck_forward(x_nchw, params, *, stride, num_groups, group_conv1x1=True):
    assert stride in (1, 2)
    N, Cin, H, W = x_nchw.shape
    mid = params['w2'].shape[0]
    Cc3 = params['w3'].shape[0]
    if stride == 1:
        assert Cin == Cc3, "stride-1 residual path needs in_channels == out_channels"

    g1 = num_groups if group_conv1x1 else 1

    # ---- fold BatchNorm (inference mode) + channel shuffle into the weights
    s1, b1 = _fold_bn(**params['bn1'])
    s2, b2 = _fold_bn(**params['bn2'])
    s3, b3 = _fold_bn(**params['bn3'])

    n_per_g = mid // num_groups
    perm = np.arange(mid).reshape(num_groups, n_per_g).T.reshape(-1)

    w1d = _expand_grouped_1x1(params['w1'], g1)[:, perm] * s1[perm][None, :]
    b1f = b1[perm]

    w2k = np.transpose(np.asarray(params['w2'])[:, 0, :, :], (1, 2, 0)).reshape(9, mid)
    w2k = w2k * s2[None, :]                                # bn2 scale -> taps

    w3d = _expand_grouped_1x1(params['w3'], num_groups) * s3[None, :]   # bn3 scale
    b3f = b2 @ w3d + b3                                     # bn2 bias folded through

    # ---- zero-pad every channel axis to a multiple of 128 lanes ------------
    CinP = _round_up(Cin, 128)
    CmidP = _round_up(mid, 128)
    Cc3P = _round_up(Cc3, 128)
    CP = CmidP + (CinP if stride == 2 else 0)      # scratch lane slabs
    CoutP = Cc3P if stride == 1 else CinP + Cc3P

    def pad2(a, r, c):
        out = np.zeros((r, c), np.float32)
        out[:a.shape[0], :a.shape[1]] = a
        return out

    def pad_row(v, c):
        out = np.zeros((1, c), np.float32)
        out[0, :v.shape[0]] = v
        return out

    w1p = jnp.asarray(pad2(w1d, CinP, CmidP), jnp.bfloat16)
    b1p = jnp.asarray(pad_row(b1f, CmidP), jnp.float32)
    w2p = jnp.asarray(pad2(w2k, 9, CmidP), jnp.float32)
    w3p = jnp.asarray(pad2(w3d, CmidP, Cc3P), jnp.bfloat16)
    b3p = jnp.asarray(pad_row(b3f, Cc3P), jnp.float32)

    # NCHW -> NHWC, zero-pad input channels onto the 128-lane axis.
    # TODO(synk): if neighbouring layers agree on NHWC / padded-lane layout,
    # these transposes and the post-kernel slice/concat disappear.
    x_nhwc = jnp.transpose(x_nchw, (0, 2, 3, 1)).astype(jnp.float32)
    x_pad = jnp.pad(x_nhwc, ((0, 0), (0, 0), (0, 0), (0, CinP - Cin)))

    kernel, Ho, Wo = _make_bottleneck_kernel(H, W, CinP, CmidP, Cc3P, CP, stride)
    Wp_alloc = _round_up(COL0 + W + 1, 8)

    # explicit VMEM budget: double-buffered per-image blocks + resident weights
    bytes_blocks = 2 * 4 * (H * W * CinP + Ho * Wo * CoutP)
    bytes_weights = 2 * (2 * (CinP * CmidP + CmidP * Cc3P)
                         + 4 * (CmidP + 9 * CmidP + Cc3P))
    bytes_scratch = 4 * ((H + 2) * Wp_alloc * CP + Ho * Wo * CmidP)
    vmem_limit = int(min(max(2 * (bytes_blocks + bytes_weights + bytes_scratch),
                             16 << 20), 64 << 20))

    out_nhwc = pl.pallas_call(
        kernel,
        out_shape=jax.ShapeDtypeStruct((N, Ho, Wo, CoutP), jnp.float32),
        grid_spec=pltpu.PrefetchScalarGridSpec(
            num_scalar_prefetch=0,
            grid=(N,),
            in_specs=[
                pl.BlockSpec((1, H, W, CinP), lambda n: (n, 0, 0, 0)),
                pl.BlockSpec((CinP, CmidP), lambda n: (0, 0)),
                pl.BlockSpec((1, CmidP), lambda n: (0, 0)),
                pl.BlockSpec((9, CmidP), lambda n: (0, 0)),
                pl.BlockSpec((CmidP, Cc3P), lambda n: (0, 0)),
                pl.BlockSpec((1, Cc3P), lambda n: (0, 0)),
            ],
            out_specs=pl.BlockSpec((1, Ho, Wo, CoutP), lambda n: (n, 0, 0, 0)),
            scratch_shapes=[
                pltpu.VMEM((1, H + 2, Wp_alloc, CP), jnp.float32),   # padded halo buf
                pltpu.VMEM((1, Ho, Wo, CmidP), jnp.float32),         # depthwise output
            ]),
        compiler_params=pltpu.CompilerParams(
            dimension_semantics=("parallel",),
            vmem_limit_bytes=vmem_limit),
    )(x_pad, w1p, b1p, w2p, w3p, b3p)

    # slice off lane padding / assemble concat outside the kernel (cheap XLA)
    if stride == 1:
        y_nhwc = out_nhwc[..., :Cc3]
    else:
        y_nhwc = jnp.concatenate(
            [out_nhwc[..., :Cin], out_nhwc[..., CinP:CinP + Cc3]], axis=-1)
    return jnp.transpose(y_nhwc, (0, 3, 1, 2))   # back to NCHW like PyTorch


# ----------------------------------------------------------------------------
# pure-JAX reference (mirrors the PyTorch forward exactly) for validation
# ----------------------------------------------------------------------------
def bottleneck_reference(x, p, *, stride, num_groups, group_conv1x1=True):
    g1 = num_groups if group_conv1x1 else 1

    def conv(x, w, s, pad, groups):
        return lax.conv_general_dilated(
            x, w, (s, s), pad, feature_group_count=groups,
            dimension_numbers=('NCHW', 'OIHW', 'NCHW'))

    def bn(x, q):
        s = q['gamma'] / jnp.sqrt(q['var'] + EPS)
        b = q['beta'] - q['mean'] * s
        return x * s[None, :, None, None] + b[None, :, None, None]

    out = jax.nn.relu(bn(conv(x, p['w1'], 1, 'VALID', g1), p['bn1']))
    b_, c, h, w = out.shape
    n = c // num_groups
    out = out.reshape(b_, num_groups, n, h, w).transpose(0, 2, 1, 3, 4).reshape(b_, c, h, w)
    out = bn(conv(out, p['w2'], stride, [(1, 1), (1, 1)], c), p['bn2'])
    out = bn(conv(out, p['w3'], 1, 'VALID', num_groups), p['bn3'])
    if stride == 2:
        res = lax.reduce_window(x, 0.0, lax.add, (1, 1, 3, 3), (1, 1, 2, 2),
                                [(0, 0), (0, 0), (1, 1), (1, 1)]) / 9.0
        out = jax.nn.relu(jnp.concatenate([res, out], axis=1))
    else:
        out = jax.nn.relu(x + out)
    return out


if __name__ == "__main__":
    key = jax.random.PRNGKey(0)
    kx, kp1, kp2 = jax.random.split(key, 3)

    N, C, H, W = 2, 16, 16, 16
    x = jax.random.normal(kx, (N, C, H, W), jnp.float32)

    # stride=1 block (residual add): in_channels == out_channels == 16, groups=2
    p1 = init_bottleneck_params(kp1, 16, 16, 1, 2)
    y1 = jax.block_until_ready(bottleneck_forward(x, p1, stride=1, num_groups=2))
    r1 = bottleneck_reference(x, p1, stride=1, num_groups=2)
    assert y1.shape == (N, 16, H, W)
    np.testing.assert_allclose(np.asarray(y1), np.asarray(r1), rtol=2e-2, atol=2e-2)

    # stride=2 block (avgpool shortcut + channel concat): 16 -> 32, groups=2
    p2 = init_bottleneck_params(kp2, 16, 32, 2, 2)
    y2 = jax.block_until_ready(bottleneck_forward(x, p2, stride=2, num_groups=2))
    r2 = bottleneck_reference(x, p2, stride=2, num_groups=2)
    assert y2.shape == (N, 32, H // 2, W // 2)
    np.testing.assert_allclose(np.asarray(y2), np.asarray(r2), rtol=2e-2, atol=2e-2)

    print("KERNEL_OK")
</pallas_src>

<mosaic_0001>
module attributes {stable_mosaic.version = 11 : i64} {
  func.func @kernel(%arg0: i32, %arg1: memref<1x16x16x128xf32, #tpu.memory_space<vmem>>, %arg2: memref<128x128xbf16, #tpu.memory_space<vmem>>, %arg3: memref<1x128xf32, #tpu.memory_space<vmem>>, %arg4: memref<9x128xf32, #tpu.memory_space<vmem>>, %arg5: memref<128x128xbf16, #tpu.memory_space<vmem>>, %arg6: memref<1x128xf32, #tpu.memory_space<vmem>>, %arg7: memref<1x16x16x128xf32, #tpu.memory_space<vmem>>, %arg8: memref<1x18x32x128xf32, #tpu.memory_space<vmem>>, %arg9: memref<1x16x16x128xf32, #tpu.memory_space<vmem>>) attributes {dimension_semantics = [#tpu.dimension_semantics<parallel>], iteration_bounds = array<i64: 2>, scalar_prefetch = 0 : i64, scratch_operands = 2 : i64, tpu.core_type = #tpu.core_type<tc>, window_params = [{transform_indices = @transform_0, window_bounds = array<i64: 1, 16, 16, 128>}, {pipeline_mode = #tpu.pipeline_mode<synchronous>, transform_indices = @transform_1, window_bounds = array<i64: 128, 128>}, {pipeline_mode = #tpu.pipeline_mode<synchronous>, transform_indices = @transform_2, window_bounds = array<i64: 1, 128>}, {pipeline_mode = #tpu.pipeline_mode<synchronous>, transform_indices = @transform_3, window_bounds = array<i64: 9, 128>}, {pipeline_mode = #tpu.pipeline_mode<synchronous>, transform_indices = @transform_4, window_bounds = array<i64: 128, 128>}, {pipeline_mode = #tpu.pipeline_mode<synchronous>, transform_indices = @transform_5, window_bounds = array<i64: 1, 128>}, {transform_indices = @transform_6, window_bounds = array<i64: 1, 16, 16, 128>}]} {
    %cst = arith.constant 0.000000e+00 : f32
    %0 = vector.broadcast %cst : f32 to vector<1x1x18x128xf32>
    %c0 = arith.constant 0 : index
    %c0_0 = arith.constant 0 : index
    %c7 = arith.constant 7 : index
    %c0_1 = arith.constant 0 : index
    %1 = vector.load %arg8[%c0, %c0_0, %c7, %c0_1] : memref<1x18x32x128xf32, #tpu.memory_space<vmem>>, vector<1x1x18x128xf32>
    tpu.vector_store %arg8[%c0, %c0_0, %c7, %c0_1], %0 {strides = array<i32>} : memref<1x18x32x128xf32, #tpu.memory_space<vmem>>, vector<1x1x18x128xf32>,
    %c0_2 = arith.constant 0 : index
    %c17 = arith.constant 17 : index
    %c7_3 = arith.constant 7 : index
    %c0_4 = arith.constant 0 : index
    %2 = vector.load %arg8[%c0_2, %c17, %c7_3, %c0_4] : memref<1x18x32x128xf32, #tpu.memory_space<vmem>>, vector<1x1x18x128xf32>
    tpu.vector_store %arg8[%c0_2, %c17, %c7_3, %c0_4], %0 {strides = array<i32>} : memref<1x18x32x128xf32, #tpu.memory_space<vmem>>, vector<1x1x18x128xf32>,
    %cst_5 = arith.constant 0.000000e+00 : f32
    %3 = vector.broadcast %cst_5 : f32 to vector<1x16x1x128xf32>
    %c0_6 = arith.constant 0 : index
    %c1 = arith.constant 1 : index
    %c7_7 = arith.constant 7 : index
    %c0_8 = arith.constant 0 : index
    %4 = vector.load %arg8[%c0_6, %c1, %c7_7, %c0_8] : memref<1x18x32x128xf32, #tpu.memory_space<vmem>>, vector<1x16x1x128xf32>
    tpu.vector_store %arg8[%c0_6, %c1, %c7_7, %c0_8], %3 {strides = array<i32>} : memref<1x18x32x128xf32, #tpu.memory_space<vmem>>, vector<1x16x1x128xf32>,
    %c0_9 = arith.constant 0 : index
    %c1_10 = arith.constant 1 : index
    %c24 = arith.constant 24 : index
    %c0_11 = arith.constant 0 : index
    %5 = vector.load %arg8[%c0_9, %c1_10, %c24, %c0_11] : memref<1x18x32x128xf32, #tpu.memory_space<vmem>>, vector<1x16x1x128xf32>
    tpu.vector_store %arg8[%c0_9, %c1_10, %c24, %c0_11], %3 {strides = array<i32>} : memref<1x18x32x128xf32, #tpu.memory_space<vmem>>, vector<1x16x1x128xf32>,
    %c0_12 = arith.constant 0 : index
    %c0_13 = arith.constant 0 : index
    %6 = vector.load %arg2[%c0_12, %c0_13] : memref<128x128xbf16, #tpu.memory_space<vmem>>, vector<128x128xbf16>
    %c0_14 = arith.constant 0 : index
    %c0_15 = arith.constant 0 : index
    %7 = vector.load %arg3[%c0_14, %c0_15] : memref<1x128xf32, #tpu.memory_space<vmem>>, vector<1x128xf32>
    %c0_16 = arith.constant 0 : index
    %c0_17 = arith.constant 0 : index
    %c0_18 = arith.constant 0 : index
    %c0_19 = arith.constant 0 : index
    %8 = vector.load %arg1[%c0_16, %c0_17, %c0_18, %c0_19] : memref<1x16x16x128xf32, #tpu.memory_space<vmem>>, vector<1x16x16x128xf32>
    %9 = vector.shape_cast %8 : vector<1x16x16x128xf32> to vector<256x128xf32>
    %10 = arith.truncf %9 : vector<256x128xf32> to vector<256x128xbf16>
    %cst_20 = arith.constant dense<0.000000e+00> : vector<256x128xf32>
    %11 = tpu.matmul %10, %6, %cst_20 {dimension_numbers = #tpu.dot_dimension_numbers<[1], [0], [0], [1], [0, 0, 1, 1], [], []>} : vector<256x128xbf16>, vector<128x128xbf16>, vector<256x128xf32> -> vector<256x128xf32>
    %12 = vector.broadcast %7 : vector<1x128xf32> to vector<256x128xf32>
    %13 = arith.addf %11, %12 : vector<256x128xf32>
    %cst_21 = arith.constant 0.000000e+00 : f32
    %14 = vector.broadcast %cst_21 : f32 to vector<256x128xf32>
    %15 = arith.maximumf %13, %14 : vector<256x128xf32>
    %16 = vector.shape_cast %15 : vector<256x128xf32> to vector<1x16x16x128xf32>
    %c0_22 = arith.constant 0 : index
    %c1_23 = arith.constant 1 : index
    %c8 = arith.constant 8 : index
    %c0_24 = arith.constant 0 : index
    %17 = vector.load %arg8[%c0_22, %c1_23, %c8, %c0_24] : memref<1x18x32x128xf32, #tpu.memory_space<vmem>>, vector<1x16x16x128xf32>
    tpu.vector_store %arg8[%c0_22, %c1_23, %c8, %c0_24], %16 {strides = array<i32>} : memref<1x18x32x128xf32, #tpu.memory_space<vmem>>, vector<1x16x16x128xf32>,
    %c0_25 = arith.constant 0 : index
    %c0_26 = arith.constant 0 : index
    %18 = vector.load %arg4[%c0_25, %c0_26] : memref<9x128xf32, #tpu.memory_space<vmem>>, vector<9x128xf32>
    %19 = vector.extract_strided_slice %18 {offsets = [0, 0], sizes = [1, 128], strides = [1, 1]} : vector<9x128xf32> to vector<1x128xf32>
    %20 = vector.shape_cast %19 : vector<1x128xf32> to vector<1x1x1x128xf32>
    %21 = vector.extract_strided_slice %18 {offsets = [1, 0], sizes = [1, 128], strides = [1, 1]} : vector<9x128xf32> to vector<1x128xf32>
    %22 = vector.shape_cast %21 : vector<1x128xf32> to vector<1x1x1x128xf32>
    %23 = vector.extract_strided_slice %18 {offsets = [2, 0], sizes = [1, 128], strides = [1, 1]} : vector<9x128xf32> to vector<1x128xf32>
    %24 = vector.shape_cast %23 : vector<1x128xf32> to vector<1x1x1x128xf32>
    %25 = vector.extract_strided_slice %18 {offsets = [3, 0], sizes = [1, 128], strides = [1, 1]} : vector<9x128xf32> to vector<1x128xf32>
    %26 = vector.shape_cast %25 : vector<1x128xf32> to vector<1x1x1x128xf32>
    %27 = vector.extract_strided_slice %18 {offsets = [4, 0], sizes = [1, 128], strides = [1, 1]} : vector<9x128xf32> to vector<1x128xf32>
    %28 = vector.shape_cast %27 : vector<1x128xf32> to vector<1x1x1x128xf32>
    %29 = vector.extract_strided_slice %18 {offsets = [5, 0], sizes = [1, 128], strides = [1, 1]} : vector<9x128xf32> to vector<1x128xf32>
    %30 = vector.shape_cast %29 : vector<1x128xf32> to vector<1x1x1x128xf32>
    %31 = vector.extract_strided_slice %18 {offsets = [6, 0], sizes = [1, 128], strides = [1, 1]} : vector<9x128xf32> to vector<1x128xf32>
    %32 = vector.shape_cast %31 : vector<1x128xf32> to vector<1x1x1x128xf32>
    %33 = vector.extract_strided_slice %18 {offsets = [7, 0], sizes = [1, 128], strides = [1, 1]} : vector<9x128xf32> to vector<1x128xf32>
    %34 = vector.shape_cast %33 : vector<1x128xf32> to vector<1x1x1x128xf32>
    %35 = vector.extract_strided_slice %18 {offsets = [8, 0], sizes = [1, 128], strides = [1, 1]} : vector<9x128xf32> to vector<1x128xf32>
    %36 = vector.shape_cast %35 : vector<1x128xf32> to vector<1x1x1x128xf32>
    %c0_27 = arith.constant 0 : index
    %c0_28 = arith.constant 0 : index
    %c7_29 = arith.constant 7 : index
    %c0_30 = arith.constant 0 : index
    %37 = vector.load %arg8[%c0_27, %c0_28, %c7_29, %c0_30] : memref<1x18x32x128xf32, #tpu.memory_space<vmem>>, vector<1x8x16x128xf32>
    %38 = vector.broadcast %20 : vector<1x1x1x128xf32> to vector<1x8x16x128xf32>
    %39 = arith.mulf %37, %38 : vector<1x8x16x128xf32>
    %c0_31 = arith.constant 0 : index
    %c0_32 = arith.constant 0 : index
    %c8_33 = arith.constant 8 : index
    %c0_34 = arith.constant 0 : index
    %40 = vector.load %arg8[%c0_31, %c0_32, %c8_33, %c0_34] : memref<1x18x32x128xf32, #tpu.memory_space<vmem>>, vector<1x8x16x128xf32>
    %41 = vector.broadcast %22 : vector<1x1x1x128xf32> to vector<1x8x16x128xf32>
    %42 = arith.mulf %40, %41 : vector<1x8x16x128xf32>
    %43 = arith.addf %39, %42 : vector<1x8x16x128xf32>
    %c0_35 = arith.constant 0 : index
    %c0_36 = arith.constant 0 : index
    %c9 = arith.constant 9 : index
    %c0_37 = arith.constant 0 : index
    %44 = vector.load %arg8[%c0_35, %c0_36, %c9, %c0_37] : memref<1x18x32x128xf32, #tpu.memory_space<vmem>>, vector<1x8x16x128xf32>
    %45 = vector.broadcast %24 : vector<1x1x1x128xf32> to vector<1x8x16x128xf32>
    %46 = arith.mulf %44, %45 : vector<1x8x16x128xf32>
    %47 = arith.addf %43, %46 : vector<1x8x16x128xf32>
    %c0_38 = arith.constant 0 : index
    %c1_39 = arith.constant 1 : index
    %c7_40 = arith.constant 7 : index
    %c0_41 = arith.constant 0 : index
    %48 = vector.load %arg8[%c0_38, %c1_39, %c7_40, %c0_41] : memref<1x18x32x128xf32, #tpu.memory_space<vmem>>, vector<1x8x16x128xf32>
    %49 = vector.broadcast %26 : vector<1x1x1x128xf32> to vector<1x8x16x128xf32>
    %50 = arith.mulf %48, %49 : vector<1x8x16x128xf32>
    %51 = arith.addf %47, %50 : vector<1x8x16x128xf32>
    %c0_42 = arith.constant 0 : index
    %c1_43 = arith.constant 1 : index
    %c8_44 = arith.constant 8 : index
    %c0_45 = arith.constant 0 : index
    %52 = vector.load %arg8[%c0_42, %c1_43, %c8_44, %c0_45] : memref<1x18x32x128xf32, #tpu.memory_space<vmem>>, vector<1x8x16x128xf32>
    %53 = vector.broadcast %28 : vector<1x1x1x128xf32> to vector<1x8x16x128xf32>
    %54 = arith.mulf %52, %53 : vector<1x8x16x128xf32>
    %55 = arith.addf %51, %54 : vector<1x8x16x128xf32>
    %c0_46 = arith.constant 0 : index
    %c1_47 = arith.constant 1 : index
    %c9_48 = arith.constant 9 : index
    %c0_49 = arith.constant 0 : index
    %56 = vector.load %arg8[%c0_46, %c1_47, %c9_48, %c0_49] : memref<1x18x32x128xf32, #tpu.memory_space<vmem>>, vector<1x8x16x128xf32>
    %57 = vector.broadcast %30 : vector<1x1x1x128xf32> to vector<1x8x16x128xf32>
    %58 = arith.mulf %56, %57 : vector<1x8x16x128xf32>
    %59 = arith.addf %55, %58 : vector<1x8x16x128xf32>
    %c0_50 = arith.constant 0 : index
    %c2 = arith.constant 2 : index
    %c7_51 = arith.constant 7 : index
    %c0_52 = arith.constant 0 : index
    %60 = vector.load %arg8[%c0_50, %c2, %c7_51, %c0_52] : memref<1x18x32x128xf32, #tpu.memory_space<vmem>>, vector<1x8x16x128xf32>
    %61 = vector.broadcast %32 : vector<1x1x1x128xf32> to vector<1x8x16x128xf32>
    %62 = arith.mulf %60, %61 : vector<1x8x16x128xf32>
    %63 = arith.addf %59, %62 : vector<1x8x16x128xf32>
    %c0_53 = arith.constant 0 : index
    %c2_54 = arith.constant 2 : index
    %c8_55 = arith.constant 8 : index
    %c0_56 = arith.constant 0 : index
    %64 = vector.load %arg8[%c0_53, %c2_54, %c8_55, %c0_56] : memref<1x18x32x128xf32, #tpu.memory_space<vmem>>, vector<1x8x16x128xf32>
    %65 = vector.broadcast %34 : vector<1x1x1x128xf32> to vector<1x8x16x128xf32>
    %66 = arith.mulf %64, %65 : vector<1x8x16x128xf32>
    %67 = arith.addf %63, %66 : vector<1x8x16x128xf32>
    %c0_57 = arith.constant 0 : index
    %c2_58 = arith.constant 2 : index
    %c9_59 = arith.constant 9 : index
    %c0_60 = arith.constant 0 : index
    %68 = vector.load %arg8[%c0_57, %c2_58, %c9_59, %c0_60] : memref<1x18x32x128xf32, #tpu.memory_space<vmem>>, vector<1x8x16x128xf32>
    %69 = vector.broadcast %36 : vector<1x1x1x128xf32> to vector<1x8x16x128xf32>
    %70 = arith.mulf %68, %69 : vector<1x8x16x128xf32>
    %71 = arith.addf %67, %70 : vector<1x8x16x128xf32>
    %c0_61 = arith.constant 0 : index
    %c0_62 = arith.constant 0 : index
    %c0_63 = arith.constant 0 : index
    %c0_64 = arith.constant 0 : index
    %72 = vector.load %arg9[%c0_61, %c0_62, %c0_63, %c0_64] : memref<1x16x16x128xf32, #tpu.memory_space<vmem>>, vector<1x8x16x128xf32>
    tpu.vector_store %arg9[%c0_61, %c0_62, %c0_63, %c0_64], %71 {strides = array<i32>} : memref<1x16x16x128xf32, #tpu.memory_space<vmem>>, vector<1x8x16x128xf32>,
    %c0_65 = arith.constant 0 : index
    %c8_66 = arith.constant 8 : index
    %c7_67 = arith.constant 7 : index
    %c0_68 = arith.constant 0 : index
    %73 = vector.load %arg8[%c0_65, %c8_66, %c7_67, %c0_68] : memref<1x18x32x128xf32, #tpu.memory_space<vmem>>, vector<1x8x16x128xf32>
    %74 = vector.broadcast %20 : vector<1x1x1x128xf32> to vector<1x8x16x128xf32>
    %75 = arith.mulf %73, %74 : vector<1x8x16x128xf32>
    %c0_69 = arith.constant 0 : index
    %c8_70 = arith.constant 8 : index
    %c8_71 = arith.constant 8 : index
    %c0_72 = arith.constant 0 : index
    %76 = vector.load %arg8[%c0_69, %c8_70, %c8_71, %c0_72] : memref<1x18x32x128xf32, #tpu.memory_space<vmem>>, vector<1x8x16x128xf32>
    %77 = vector.broadcast %22 : vector<1x1x1x128xf32> to vector<1x8x16x128xf32>
    %78 = arith.mulf %76, %77 : vector<1x8x16x128xf32>
    %79 = arith.addf %75, %78 : vector<1x8x16x128xf32>
    %c0_73 = arith.constant 0 : index
    %c8_74 = arith.constant 8 : index
    %c9_75 = arith.constant 9 : index
    %c0_76 = arith.constant 0 : index
    %80 = vector.load %arg8[%c0_73, %c8_74, %c9_75, %c0_76] : memref<1x18x32x128xf32, #tpu.memory_space<vmem>>, vector<1x8x16x128xf32>
    %81 = vector.broadcast %24 : vector<1x1x1x128xf32> to vector<1x8x16x128xf32>
    %82 = arith.mulf %80, %81 : vector<1x8x16x128xf32>
    %83 = arith.addf %79, %82 : vector<1x8x16x128xf32>
    %c0_77 = arith.constant 0 : index
    %c9_78 = arith.constant 9 : index
    %c7_79 = arith.constant 7 : index
    %c0_80 = arith.constant 0 : index
    %84 = vector.load %arg8[%c0_77, %c9_78, %c7_79, %c0_80] : memref<1x18x32x128xf32, #tpu.memory_space<vmem>>, vector<1x8x16x128xf32>
    %85 = vector.broadcast %26 : vector<1x1x1x128xf32> to vector<1x8x16x128xf32>
    %86 = arith.mulf %84, %85 : vector<1x8x16x128xf32>
    %87 = arith.addf %83, %86 : vector<1x8x16x128xf32>
    %c0_81 = arith.constant 0 : index
    %c9_82 = arith.constant 9 : index
    %c8_83 = arith.constant 8 : index
    %c0_84 = arith.constant 0 : index
    %88 = vector.load %arg8[%c0_81, %c9_82, %c8_83, %c0_84] : memref<1x18x32x128xf32, #tpu.memory_space<vmem>>, vector<1x8x16x128xf32>
    %89 = vector.broadcast %28 : vector<1x1x1x128xf32> to vector<1x8x16x128xf32>
    %90 = arith.mulf %88, %89 : vector<1x8x16x128xf32>
    %91 = arith.addf %87, %90 : vector<1x8x16x128xf32>
    %c0_85 = arith.constant 0 : index
    %c9_86 = arith.constant 9 : index
    %c9_87 = arith.constant 9 : index
    %c0_88 = arith.constant 0 : index
    %92 = vector.load %arg8[%c0_85, %c9_86, %c9_87, %c0_88] : memref<1x18x32x128xf32, #tpu.memory_space<vmem>>, vector<1x8x16x128xf32>
    %93 = vector.broadcast %30 : vector<1x1x1x128xf32> to vector<1x8x16x128xf32>
    %94 = arith.mulf %92, %93 : vector<1x8x16x128xf32>
    %95 = arith.addf %91, %94 : vector<1x8x16x128xf32>
    %c0_89 = arith.constant 0 : index
    %c10 = arith.constant 10 : index
    %c7_90 = arith.constant 7 : index
    %c0_91 = arith.constant 0 : index
    %96 = vector.load %arg8[%c0_89, %c10, %c7_90, %c0_91] : memref<1x18x32x128xf32, #tpu.memory_space<vmem>>, vector<1x8x16x128xf32>
    %97 = vector.broadcast %32 : vector<1x1x1x128xf32> to vector<1x8x16x128xf32>
    %98 = arith.mulf %96, %97 : vector<1x8x16x128xf32>
    %99 = arith.addf %95, %98 : vector<1x8x16x128xf32>
    %c0_92 = arith.constant 0 : index
    %c10_93 = arith.constant 10 : index
    %c8_94 = arith.constant 8 : index
    %c0_95 = arith.constant 0 : index
    %100 = vector.load %arg8[%c0_92, %c10_93, %c8_94, %c0_95] : memref<1x18x32x128xf32, #tpu.memory_space<vmem>>, vector<1x8x16x128xf32>
    %101 = vector.broadcast %34 : vector<1x1x1x128xf32> to vector<1x8x16x128xf32>
    %102 = arith.mulf %100, %101 : vector<1x8x16x128xf32>
    %103 = arith.addf %99, %102 : vector<1x8x16x128xf32>
    %c0_96 = arith.constant 0 : index
    %c10_97 = arith.constant 10 : index
    %c9_98 = arith.constant 9 : index
    %c0_99 = arith.constant 0 : index
    %104 = vector.load %arg8[%c0_96, %c10_97, %c9_98, %c0_99] : memref<1x18x32x128xf32, #tpu.memory_space<vmem>>, vector<1x8x16x128xf32>
    %105 = vector.broadcast %36 : vector<1x1x1x128xf32> to vector<1x8x16x128xf32>
    %106 = arith.mulf %104, %105 : vector<1x8x16x128xf32>
    %107 = arith.addf %103, %106 : vector<1x8x16x128xf32>
    %c0_100 = arith.constant 0 : index
    %c8_101 = arith.constant 8 : index
    %c0_102 = arith.constant 0 : index
    %c0_103 = arith.constant 0 : index
    %108 = vector.load %arg9[%c0_100, %c8_101, %c0_102, %c0_103] : memref<1x16x16x128xf32, #tpu.memory_space<vmem>>, vector<1x8x16x128xf32>
    tpu.vector_store %arg9[%c0_100, %c8_101, %c0_102, %c0_103], %107 {strides = array<i32>} : memref<1x16x16x128xf32, #tpu.memory_space<vmem>>, vector<1x8x16x128xf32>,
    %c0_104 = arith.constant 0 : index
    %c0_105 = arith.constant 0 : index
    %109 = vector.load %arg5[%c0_104, %c0_105] : memref<128x128xbf16, #tpu.memory_space<vmem>>, vector<128x128xbf16>
    %c0_106 = arith.constant 0 : index
    %c0_107 = arith.constant 0 : index
    %110 = vector.load %arg6[%c0_106, %c0_107] : memref<1x128xf32, #tpu.memory_space<vmem>>, vector<1x128xf32>
    %c0_108 = arith.constant 0 : index
    %c0_109 = arith.constant 0 : index
    %c0_110 = arith.constant 0 : index
    %c0_111 = arith.constant 0 : index
    %111 = vector.load %arg9[%c0_108, %c0_109, %c0_110, %c0_111] : memref<1x16x16x128xf32, #tpu.memory_space<vmem>>, vector<1x16x16x128xf32>
    %112 = vector.shape_cast %111 : vector<1x16x16x128xf32> to vector<256x128xf32>
    %113 = arith.truncf %112 : vector<256x128xf32> to vector<256x128xbf16>
    %cst_112 = arith.constant dense<0.000000e+00> : vector<256x128xf32>
    %114 = tpu.matmul %113, %109, %cst_112 {dimension_numbers = #tpu.dot_dimension_numbers<[1], [0], [0], [1], [0, 0, 1, 1], [], []>} : vector<256x128xbf16>, vector<128x128xbf16>, vector<256x128xf32> -> vector<256x128xf32>
    %115 = vector.broadcast %110 : vector<1x128xf32> to vector<256x128xf32>
    %116 = arith.addf %114, %115 : vector<256x128xf32>
    %117 = vector.shape_cast %116 : vector<256x128xf32> to vector<1x16x16x128xf32>
    %c0_113 = arith.constant 0 : index
    %c0_114 = arith.constant 0 : index
    %c0_115 = arith.constant 0 : index
    %c0_116 = arith.constant 0 : index
    %118 = vector.load %arg1[%c0_113, %c0_114, %c0_115, %c0_116] : memref<1x16x16x128xf32, #tpu.memory_space<vmem>>, vector<1x16x16x128xf32>
    %119 = arith.addf %118, %117 : vector<1x16x16x128xf32>
    %cst_117 = arith.constant 0.000000e+00 : f32
    %120 = vector.broadcast %cst_117 : f32 to vector<1x16x16x128xf32>
    %121 = arith.maximumf %119, %120 : vector<1x16x16x128xf32>
    %c0_118 = arith.constant 0 : index
    %c0_119 = arith.constant 0 : index
    %c0_120 = arith.constant 0 : index
    %c0_121 = arith.constant 0 : index
    %122 = vector.load %arg7[%c0_118, %c0_119, %c0_120, %c0_121] : memref<1x16x16x128xf32, #tpu.memory_space<vmem>>, vector<1x16x16x128xf32>
    tpu.vector_store %arg7[%c0_118, %c0_119, %c0_120, %c0_121], %121 {strides = array<i32>} : memref<1x16x16x128xf32, #tpu.memory_space<vmem>>, vector<1x16x16x128xf32>,
    return
  }
  func.func @transform_0(%arg0: i32) -> (i32, i32, i32, i32) {
    %c0_i32 = arith.constant 0 : i32
    %c0_i32_0 = arith.constant 0 : i32
    %c0_i32_1 = arith.constant 0 : i32
    %c0_i32_2 = arith.constant 0 : i32
    return %arg0, %c0_i32, %c0_i32_0, %c0_i32_1 : i32, i32, i32, i32
  }
  func.func @transform_1(%arg0: i32) -> (i32, i32) {
    %c0_i32 = arith.constant 0 : i32
    %c0_i32_0 = arith.constant 0 : i32
    %c0_i32_1 = arith.constant 0 : i32
    return %c0_i32, %c0_i32_0 : i32, i32
  }
  func.func @transform_2(%arg0: i32) -> (i32, i32) {
    %c0_i32 = arith.constant 0 : i32
    %c0_i32_0 = arith.constant 0 : i32
    %c0_i32_1 = arith.constant 0 : i32
    return %c0_i32, %c0_i32_0 : i32, i32
  }
  func.func @transform_3(%arg0: i32) -> (i32, i32) {
    %c0_i32 = arith.constant 0 : i32
    %c0_i32_0 = arith.constant 0 : i32
    %c0_i32_1 = arith.constant 0 : i32
    return %c0_i32, %c0_i32_0 : i32, i32
  }
  func.func @transform_4(%arg0: i32) -> (i32, i32) {
    %c0_i32 = arith.constant 0 : i32
    %c0_i32_0 = arith.constant 0 : i32
    %c0_i32_1 = arith.constant 0 : i32
    return %c0_i32, %c0_i32_0 : i32, i32
  }
  func.func @transform_5(%arg0: i32) -> (i32, i32) {
    %c0_i32 = arith.constant 0 : i32
    %c0_i32_0 = arith.constant 0 : i32
    %c0_i32_1 = arith.constant 0 : i32
    return %c0_i32, %c0_i32_0 : i32, i32
  }
  func.func @transform_6(%arg0: i32) -> (i32, i32, i32, i32) {
    %c0_i32 = arith.constant 0 : i32
    %c0_i32_0 = arith.constant 0 : i32
    %c0_i32_1 = arith.constant 0 : i32
    %c0_i32_2 = arith.constant 0 : i32
    return %arg0, %c0_i32, %c0_i32_0, %c0_i32_1 : i32, i32, i32, i32
  }
}

</mosaic_0001>

<llo_original>
// kernel: tpu_custom_call.1
$region0: #{tpu_custom_call.1}
  #allocation0 [shape = 'u32[]', space=smem, size = 0x4, offset = 0x4, fixed_abs, tag = 'smem constant byte address 0x4 - core index']
  #allocation1 [shape = 'u32[144,128]{1,0:T(1,128)}', space=vmem, size = 0x12000, scoped, tag = 'internal scratch']
  #allocation2 [shape = 'f32[1,18,32,128]{3,2,1,0:T(8,128)}', space=vmem, size = 0x48000, scoped, tag = 'scratch operand']
  #allocation3 [shape = 'f32[1,16,16,128]{3,2,1,0:T(8,128)}', space=vmem, size = 0x20000, scoped, tag = 'scratch operand']
  %s0 = inlined_call_operand.hbm [shape: f32[2,16,16,128], index: 0, kind: input, shape index: {}]
  %s1 = inlined_call_operand.hbm [shape: bf16[128,128], index: 1, kind: input, shape index: {}]
  %s2 = inlined_call_operand.vmem [shape: f32[1,128], index: 2, kind: input, shape index: {}]
  %s3 = inlined_call_operand.hbm [shape: f32[9,128], index: 3, kind: input, shape index: {}]
  %s4 = inlined_call_operand.hbm [shape: bf16[128,128], index: 4, kind: input, shape index: {}]
  %s5 = inlined_call_operand.vmem [shape: f32[1,128], index: 5, kind: input, shape index: {}]
  %s6 = inlined_call_operand.hbm [shape: f32[2,16,16,128], index: 6, kind: output, shape index: {}]
  %s7 = sld [smem:[#allocation0]]
  $region73: #{tpu_custom_call.1} parent=0
    _
  %s9 = ssub.s32 1, %s7
  %s10 = scalar_select 0, %s9, %s7
  $region1: #{tpu_custom_call.1} parent=0
    #allocation4 [shape = 'u8[262144]{0}', space=vmem, size = 0x40000, scoped, tag = 'input window, operand 0']
    #allocation5 [shape = 's32[2]{0}', space=sflag, size = 0x8, scoped, tag = 'scoped memory for tpu_custom_call.1']
    #allocation6 [shape = 's32[2]{0}', space=sflag, size = 0x8, scoped, tag = 'scoped memory for tpu_custom_call.1']
    #allocation7 [shape = 'u8[32768]{0}', space=vmem, size = 0x8000, scoped, tag = 'input window, operand 1, single buffered']
    #allocation8 [shape = 's32[1]{0}', space=sflag, size = 0x4, scoped, tag = 'scoped memory for tpu_custom_call.1']
    #allocation9 [shape = 'u8[8192]{0}', space=vmem, size = 0x2000, scoped, tag = 'input window, operand 3, single buffered']
    #allocation10 [shape = 'u8[32768]{0}', space=vmem, size = 0x8000, scoped, tag = 'input window, operand 4, single buffered']
    #allocation11 [shape = 's32[1]{0}', space=sflag, size = 0x4, scoped, tag = 'scoped memory for tpu_custom_call.1']
    #allocation12 [shape = 'u8[262144]{0}', space=vmem, size = 0x40000, scoped, tag = 'output window, operand 0']
    %11 = vsyncpa [#allocation5], 0
    %s12 = scalar_lea.sflag [#allocation5], 1
    %13 = vsyncpa %s12, 0
    %14 = vsyncpa [#allocation8], 0
    %15 = vsyncpa [#allocation11], 0
    %16 = vsyncpa [#allocation6], 0
    %s17 = scalar_lea.sflag [#allocation6], 1
    %18 = vsyncpa %s17, 0
    loop: start=0, step=1, limit=4
    $region2: #{tpu_custom_call.1} parent=1 // loop_pre_header
      _
    $region3: #{tpu_custom_call.1} parent=1 // loop_header
      %s20 = sphi 0, %s24
      %p21 = scmp.ge.s32.totalorder %s20, 4
      %s30 = sphi 0, %s32
      %s33 = sphi 0, %s30
      %s34 = sphi 0, %s33
      %s50 = sphi 0, %s34
      %s54 = sphi 0, %s54
      %s56 = sphi 0, %s54
      %s57 = sphi 0, %s56
      %s71 = sphi 0, %s57
      %s75 = sphi 0, %s75
      %s77 = sphi 0, %s75
      %s78 = sphi 0, %s77
      %s92 = sphi 0, %s78
      %s96 = sphi 0, %s96
      %s98 = sphi 0, %s96
      %s99 = sphi 0, %s98
      %s113 = sphi 0, %s99
      %s117 = sphi 0, %s117
      %s119 = sphi 0, %s117
      %s120 = sphi 0, %s119
      %s134 = sphi 0, %s120
      %s138 = sphi 0, %s138
      %s140 = sphi 0, %s138
      %s141 = sphi 0, %s140
      %s155 = sphi 0, %s141
      %s161 = sphi 0, %s163
      %s164 = sphi 0, %s161
      %s165 = sphi 0, %s164
      %s181 = sphi 0, %s165
    $region4: #{tpu_custom_call.1} parent=1 // loop_header_branch
      %23 = sbr.rel (%p21) target = $region8
    $region5: #{tpu_custom_call.1} parent=1 // loop_body
      %s25 = ssub.s32 %s20, 1
      %s26 = ssub.s32 %s20, 2
      %s27 = sadd.s32 %s20, 1
      %s28 = ssub.s32 %s20, %s27
      %p29 = scmp.eq.s32.totalorder %s28, 0
      %s31 = sadd.s32 %s30, 1
      %s32 = scalar_select %p29, %s30, %s31
      %p35 = pneg %p29
      %p36 = scmp.eq.s32.totalorder %s20, 1
      %p37 = por %p35, %p36
      %p38 = scmp.ne.s32.totalorder %s30, %s33
      %p39 = scmp.eq.s32.totalorder %s20, 0
      %p40 = por %p38, %p39
      %p41 = scmp.ne.s32.totalorder %s30, %s33
      %p42 = scmp.eq.s32.totalorder %s25, 1
      %p43 = por %p41, %p42
      %p44 = scmp.ne.s32.totalorder %s33, %s34
      %p45 = scmp.eq.s32.totalorder %s25, 0
      %p46 = por %p44, %p45
      %p47 = scmp.ne.s32.totalorder %s33, %s34
      %p48 = scmp.eq.s32.totalorder %s26, 1
      %p49 = por %p47, %p48
      %p51 = scmp.ne.s32.totalorder %s34, %s50
      %p52 = scmp.eq.s32.totalorder %s26, 0
      %p53 = por %p51, %p52
      %s55 = sadd.s32 %s54, 1
      %p58 = scmp.eq.s32.totalorder %s20, 1
      %p59 = scmp.ne.s32.totalorder %s54, %s56
      %p60 = scmp.eq.s32.totalorder %s20, 0
      %p61 = por %p59, %p60
      %p62 = scmp.ne.s32.totalorder %s54, %s56
      %p63 = scmp.eq.s32.totalorder %s25, 1
      %p64 = por %p62, %p63
      %p65 = scmp.ne.s32.totalorder %s56, %s57
      %p66 = scmp.eq.s32.totalorder %s25, 0
      %p67 = por %p65, %p66
      %p68 = scmp.ne.s32.totalorder %s56, %s57
      %p69 = scmp.eq.s32.totalorder %s26, 1
      %p70 = por %p68, %p69
      %p72 = scmp.ne.s32.totalorder %s57, %s71
      %p73 = scmp.eq.s32.totalorder %s26, 0
      %p74 = por %p72, %p73
      %s76 = sadd.s32 %s75, 1
      %p79 = scmp.eq.s32.totalorder %s20, 1
      %p80 = scmp.ne.s32.totalorder %s75, %s77
      %p81 = scmp.eq.s32.totalorder %s20, 0
      %p82 = por %p80, %p81
      %p83 = scmp.ne.s32.totalorder %s75, %s77
      %p84 = scmp.eq.s32.totalorder %s25, 1
      %p85 = por %p83, %p84
      %p86 = scmp.ne.s32.totalorder %s77, %s78
      %p87 = scmp.eq.s32.totalorder %s25, 0
      %p88 = por %p86, %p87
      %p89 = scmp.ne.s32.totalorder %s77, %s78
      %p90 = scmp.eq.s32.totalorder %s26, 1
      %p91 = por %p89, %p90
      %p93 = scmp.ne.s32.totalorder %s78, %s92
      %p94 = scmp.eq.s32.totalorder %s26, 0
      %p95 = por %p93, %p94
      %s97 = sadd.s32 %s96, 1
      %p100 = scmp.eq.s32.totalorder %s20, 1
      %p101 = scmp.ne.s32.totalorder %s96, %s98
      %p102 = scmp.eq.s32.totalorder %s20, 0
      %p103 = por %p101, %p102
      %p104 = scmp.ne.s32.totalorder %s96, %s98
      %p105 = scmp.eq.s32.totalorder %s25, 1
      %p106 = por %p104, %p105
      %p107 = scmp.ne.s32.totalorder %s98, %s99
      %p108 = scmp.eq.s32.totalorder %s25, 0
      %p109 = por %p107, %p108
      %p110 = scmp.ne.s32.totalorder %s98, %s99
      %p111 = scmp.eq.s32.totalorder %s26, 1
      %p112 = por %p110, %p111
      %p114 = scmp.ne.s32.totalorder %s99, %s113
      %p115 = scmp.eq.s32.totalorder %s26, 0
      %p116 = por %p114, %p115
      %s118 = sadd.s32 %s117, 1
      %p121 = scmp.eq.s32.totalorder %s20, 1
      %p122 = scmp.ne.s32.totalorder %s117, %s119
      %p123 = scmp.eq.s32.totalorder %s20, 0
      %p124 = por %p122, %p123
      %p125 = scmp.ne.s32.totalorder %s117, %s119
      %p126 = scmp.eq.s32.totalorder %s25, 1
      %p127 = por %p125, %p126
      %p128 = scmp.ne.s32.totalorder %s119, %s120
      %p129 = scmp.eq.s32.totalorder %s25, 0
      %p130 = por %p128, %p129
      %p131 = scmp.ne.s32.totalorder %s119, %s120
      %p132 = scmp.eq.s32.totalorder %s26, 1
      %p133 = por %p131, %p132
      %p135 = scmp.ne.s32.totalorder %s120, %s134
      %p136 = scmp.eq.s32.totalorder %s26, 0
      %p137 = por %p135, %p136
      %s139 = sadd.s32 %s138, 1
      %p142 = scmp.eq.s32.totalorder %s20, 1
      %p143 = scmp.ne.s32.totalorder %s138, %s140
      %p144 = scmp.eq.s32.totalorder %s20, 0
      %p145 = por %p143, %p144
      %p146 = scmp.ne.s32.totalorder %s138, %s140
      %p147 = scmp.eq.s32.totalorder %s25, 1
      %p148 = por %p146, %p147
      %p149 = scmp.ne.s32.totalorder %s140, %s141
      %p150 = scmp.eq.s32.totalorder %s25, 0
      %p151 = por %p149, %p150
      %p152 = scmp.ne.s32.totalorder %s140, %s141
      %p153 = scmp.eq.s32.totalorder %s26, 1
      %p154 = por %p152, %p153
      %p156 = scmp.ne.s32.totalorder %s141, %s155
      %p157 = scmp.eq.s32.totalorder %s26, 0
      %p158 = por %p156, %p157
      %s159 = ssub.s32 %s20, %s27
      %p160 = scmp.eq.s32.totalorder %s159, 0
      %s162 = sadd.s32 %s161, 1
      %s163 = scalar_select %p160, %s161, %s162
      %p166 = pneg %p160
      %p167 = scmp.eq.s32.totalorder %s20, 1
      %p168 = por %p166, %p167
      %p169 = scmp.ne.s32.totalorder %s161, %s164
      %p170 = scmp.eq.s32.totalorder %s20, 0
      %p171 = por %p169, %p170
      %p172 = scmp.ne.s32.totalorder %s161, %s164
      %p173 = scmp.eq.s32.totalorder %s25, 1
      %p174 = por %p172, %p173
      %p175 = scmp.ne.s32.totalorder %s164, %s165
      %p176 = scmp.eq.s32.totalorder %s25, 0
      %p177 = por %p175, %p176
      %p178 = scmp.ne.s32.totalorder %s164, %s165
      %p179 = scmp.eq.s32.totalorder %s26, 1
      %p180 = por %p178, %p179
      %p182 = scmp.ne.s32.totalorder %s165, %s181
      %p183 = scmp.eq.s32.totalorder %s26, 0
      %p184 = por %p182, %p183
      %p185 = scmp.le.s32.totalorder 1, %s20
      %p186 = scmp.lt.s32.totalorder %s20, 3
      %p187 = pnand %p185, %p186
      %p188 = pneg %p187
      // Predicated region
      $region9: #{tpu_custom_call.1} parent=5 // pred_check
        _
      $region10: #{tpu_custom_call.1} parent=5 // pred_check_branch
        %190 = sbr.rel (%p187) target = $region12
      $region11: #{tpu_custom_call.1} parent=5 // pred_region
        %s191 = ssub.s32 %s20, 1
        // Predicated region
        $region13: #{tpu_custom_call.1} parent=11 // pred_check
          %p192 = pneg %p67
        $region14: #{tpu_custom_call.1} parent=11 // pred_check_branch
          %194 = sbr.rel (%p192) target = $region16
        $region15: #{tpu_custom_call.1} parent=11 // pred_region
          %s196 = ssub.s32 1024, 1024
          %197 = vsyncadd [#allocation8], %s196
          %s198 = sshll.u32 [#allocation7], 4
          %s199 = int_to_ptr.vmem [resolvable:$true] %s198
          %204 = dma.hbm_to_vmem [thread:$0]  %s1, 1024, %s199, [#allocation8], 64, 64, 4
        $region16: #{tpu_custom_call.1} parent=11 // pred_fallthru
          _
        // Predicated region
        $region17: #{tpu_custom_call.1} parent=11 // pred_check
          %p205 = pneg %p88
        $region18: #{tpu_custom_call.1} parent=11 // pred_check_branch
          %207 = sbr.rel (%p205) target = $region20
        $region19: #{tpu_custom_call.1} parent=11 // pred_region
          _
        $region20: #{tpu_custom_call.1} parent=11 // pred_fallthru
          _
        // Predicated region
        $region21: #{tpu_custom_call.1} parent=11 // pred_check
          %p208 = pneg %p109
        $region22: #{tpu_custom_call.1} parent=11 // pred_check_branch
          %210 = sbr.rel (%p208) target = $region24
        $region23: #{tpu_custom_call.1} parent=11 // pred_region
          %s212 = ssub.s32 256, 256
          %213 = vsyncadd [#allocation8], %s212
          %s214 = sshll.u32 [#allocation9], 4
          %s215 = int_to_ptr.vmem [resolvable:$true] %s214
          %220 = dma.hbm_to_vmem [thread:$0]  %s3, 256, %s215, [#allocation8], 128, 128, 8
        $region24: #{tpu_custom_call.1} parent=11 // pred_fallthru
          _
        // Predicated region
        $region25: #{tpu_custom_call.1} parent=11 // pred_check
          %p221 = pneg %p130
        $region26: #{tpu_custom_call.1} parent=11 // pred_check_branch
          %223 = sbr.rel (%p221) target = $region28
        $region27: #{tpu_custom_call.1} parent=11 // pred_region
          %s225 = ssub.s32 1024, 1024
          %226 = vsyncadd [#allocation11], %s225
          %s227 = sshll.u32 [#allocation10], 4
          %s228 = int_to_ptr.vmem [resolvable:$true] %s227
          %233 = dma.hbm_to_vmem [thread:$0]  %s4, 1024, %s228, [#allocation11], 64, 64, 4
        $region28: #{tpu_custom_call.1} parent=11 // pred_fallthru
          _
        // Predicated region
        $region29: #{tpu_custom_call.1} parent=11 // pred_check
          %p234 = pneg %p151
        $region30: #{tpu_custom_call.1} parent=11 // pred_check_branch
          %236 = sbr.rel (%p234) target = $region32
        $region31: #{tpu_custom_call.1} parent=11 // pred_region
          _
        $region32: #{tpu_custom_call.1} parent=11 // pred_fallthru
          _
      $region12: #{tpu_custom_call.1} parent=5 // pred_fallthru
        _
      %p237 = scmp.lt.s32.totalorder %s20, 2
      // Predicated region
      $region33: #{tpu_custom_call.1} parent=5 // pred_check
        %p238 = pneg %p237
      $region34: #{tpu_custom_call.1} parent=5 // pred_check_branch
        %240 = sbr.rel (%p238) target = $region36
      $region35: #{tpu_custom_call.1} parent=5 // pred_region
        // Predicated region
        $region37: #{tpu_custom_call.1} parent=35 // pred_check
          %p241 = pneg %p40
        $region38: #{tpu_custom_call.1} parent=35 // pred_check_branch
          %243 = sbr.rel (%p241) target = $region40
        $region39: #{tpu_custom_call.1} parent=35 // pred_region
          %s244 = sand.u32 %s30, 1
          %s245 = scalar_lea.sflag [#allocation5], %s244
          %s246 = sand.u32 %s30, 1
          %s247 = smul.addr %s246, 256
          %s248 = scalar_lea.vmem [#allocation4], %s247
          %s250 = ssub.s32 4096, 4096
          %251 = vsyncadd %s245, %s250
          %s252 = smul.addr %s20, 32
          %s253 = smul.addr %s252, 128
          %s254 = scalar_lea.hbm %s0, %s253
          %s255 = sshll.u32 %s248, 4
          %s256 = int_to_ptr.vmem [resolvable:$true] %s255
          %261 = dma.hbm_to_vmem [thread:$0]  %s254, 4096, %s256, %s245, 128, 128, 8
        $region40: #{tpu_custom_call.1} parent=35 // pred_fallthru
          _
      $region36: #{tpu_custom_call.1} parent=5 // pred_fallthru
        _
      %p262 = scmp.le.s32.totalorder 1, %s20
      %p263 = scmp.lt.s32.totalorder %s20, 3
      %p264 = pnand %p262, %p263
      %p265 = pneg %p264
      // Predicated region
      $region41: #{tpu_custom_call.1} parent=5 // pred_check
        _
      $region42: #{tpu_custom_call.1} parent=5 // pred_check_branch
        %267 = sbr.rel (%p264) target = $region44
      $region43: #{tpu_custom_call.1} parent=5 // pred_region
        %s268 = ssub.s32 %s20, 1
        %s269 = sand.u32 %s33, 1
        %s270 = scalar_lea.sflag [#allocation5], %s269
        %s271 = sand.u32 %s33, 1
        %s272 = smul.addr %s271, 256
        %s273 = scalar_lea.vmem [#allocation4], %s272
        // Predicated region
        $region45: #{tpu_custom_call.1} parent=43 // pred_check
          %p274 = pneg %p46
        $region46: #{tpu_custom_call.1} parent=43 // pred_check_branch
          %276 = sbr.rel (%p274) target = $region48
        $region47: #{tpu_custom_call.1} parent=43 // pred_region
          %277 = dma.done %s270, 4096
        $region48: #{tpu_custom_call.1} parent=43 // pred_fallthru
          _
        // Predicated region
        $region49: #{tpu_custom_call.1} parent=43 // pred_check
          %p278 = pneg %p67
        $region50: #{tpu_custom_call.1} parent=43 // pred_check_branch
          %280 = sbr.rel (%p278) target = $region52
        $region51: #{tpu_custom_call.1} parent=43 // pred_region
          %281 = dma.done [#allocation8], 1024
        $region52: #{tpu_custom_call.1} parent=43 // pred_fallthru
          _
        // Predicated region
        $region53: #{tpu_custom_call.1} parent=43 // pred_check
          %p282 = pneg %p109
        $region54: #{tpu_custom_call.1} parent=43 // pred_check_branch
          %284 = sbr.rel (%p282) target = $region56
        $region55: #{tpu_custom_call.1} parent=43 // pred_region
          %285 = dma.done [#allocation8], 256
        $region56: #{tpu_custom_call.1} parent=43 // pred_fallthru
          _
        // Predicated region
        $region57: #{tpu_custom_call.1} parent=43 // pred_check
          %p286 = pneg %p130
        $region58: #{tpu_custom_call.1} parent=43 // pred_check_branch
          %288 = sbr.rel (%p286) target = $region60
        $region59: #{tpu_custom_call.1} parent=43 // pred_region
          %289 = dma.done [#allocation11], 1024
        $region60: #{tpu_custom_call.1} parent=43 // pred_fallthru
          _
        %s290 = sand.u32 %s33, 1
        %s291 = scalar_lea.sflag [#allocation5], %s290
        %s292 = sand.u32 %s33, 1
        %s293 = smul.addr %s292, 256
        %s294 = scalar_lea.vmem [#allocation4], %s293
        %p295 = pneg %p46
        %p296 = pneg %p43
        %p297 = pneg %p67
        %p298 = pneg %p64
        %p299 = pneg %p88
        %p300 = pneg %p85
        %p301 = pneg %p109
        %p302 = pneg %p106
        %p303 = pneg %p130
        %p304 = pneg %p127
        %p305 = pneg %p151
        %p306 = pneg %p148
        %p307 = pneg %p177
        %p308 = pneg %p174
        %s309 = sand.u32 %s164, 1
        %s310 = scalar_lea.sflag [#allocation6], %s309
        %s311 = sand.u32 %s164, 1
        %s312 = smul.addr %s311, 256
        %s313 = scalar_lea.vmem [#allocation12], %s312
        %315 = vst [vmem:[#allocation2 + $0x7] sm:$0xff] 0.0
        %316 = vst [vmem:[#allocation2 + $0xf] sm:$0xff] 0.0
        %317 = vst [vmem:[#allocation2 + $0x17] sm:$0x3] 0.0
        %s318 = scalar_lea.vmem [#allocation2], 544
        %319 = vst [vmem:[%s318 + $0x7] sm:$0xff] 0.0
        %320 = vst [vmem:[%s318 + $0xf] sm:$0xff] 0.0
        %321 = vst [vmem:[%s318 + $0x17] sm:$0x3] 0.0
        %s322 = scalar_lea.vmem [#allocation2], 32
        %323 = vst [vmem:[%s322 + $0x7] sm:$0x1] 0.0
        %324 = vst [vmem:[%s322 + $0x27] sm:$0x1] 0.0
        %325 = vst [vmem:[%s322 + $0x47] sm:$0x1] 0.0
        %326 = vst [vmem:[%s322 + $0x67] sm:$0x1] 0.0
        %327 = vst [vmem:[%s322 + $0x87] sm:$0x1] 0.0
        %328 = vst [vmem:[%s322 + $0xa7] sm:$0x1] 0.0
        %329 = vst [vmem:[%s322 + $0xc7] sm:$0x1] 0.0
        %330 = vst [vmem:[%s322 + $0xe7] sm:$0x1] 0.0
        %331 = vst [vmem:[%s322 + $0x107] sm:$0x1] 0.0
        %332 = vst [vmem:[%s322 + $0x127] sm:$0x1] 0.0
        %333 = vst [vmem:[%s322 + $0x147] sm:$0x1] 0.0
        %334 = vst [vmem:[%s322 + $0x167] sm:$0x1] 0.0
        %335 = vst [vmem:[%s322 + $0x187] sm:$0x1] 0.0
        %336 = vst [vmem:[%s322 + $0x1a7] sm:$0x1] 0.0
        %337 = vst [vmem:[%s322 + $0x1c7] sm:$0x1] 0.0
        %338 = vst [vmem:[%s322 + $0x1e7] sm:$0x1] 0.0
        %339 = vst [vmem:[%s322 + $0x18] sm:$0x1] 0.0
        %340 = vst [vmem:[%s322 + $0x38] sm:$0x1] 0.0
        %341 = vst [vmem:[%s322 + $0x58] sm:$0x1] 0.0
        %342 = vst [vmem:[%s322 + $0x78] sm:$0x1] 0.0
        %343 = vst [vmem:[%s322 + $0x98] sm:$0x1] 0.0
        %344 = vst [vmem:[%s322 + $0xb8] sm:$0x1] 0.0
        %345 = vst [vmem:[%s322 + $0xd8] sm:$0x1] 0.0
        %346 = vst [vmem:[%s322 + $0xf8] sm:$0x1] 0.0
        %347 = vst [vmem:[%s322 + $0x118] sm:$0x1] 0.0
        %348 = vst [vmem:[%s322 + $0x138] sm:$0x1] 0.0
        %349 = vst [vmem:[%s322 + $0x158] sm:$0x1] 0.0
        %350 = vst [vmem:[%s322 + $0x178] sm:$0x1] 0.0
        %351 = vst [vmem:[%s322 + $0x198] sm:$0x1] 0.0
        %352 = vst [vmem:[%s322 + $0x1b8] sm:$0x1] 0.0
        %353 = vst [vmem:[%s322 + $0x1d8] sm:$0x1] 0.0
        %354 = vst [vmem:[%s322 + $0x1f8] sm:$0x1] 0.0
        %v355 = vld [vmem:[#allocation7] sm:$0xf]
        %v356 = vld [vmem:[#allocation7 + $0x4] sm:$0xf]
        %v357 = vld [vmem:[#allocation7 + $0x8] sm:$0xf]
        %v358 = vld [vmem:[#allocation7 + $0xc] sm:$0xf]
        %v359 = vld [vmem:[#allocation7 + $0x10] sm:$0xf]
        %v360 = vld [vmem:[#allocation7 + $0x14] sm:$0xf]
        %v361 = vld [vmem:[#allocation7 + $0x18] sm:$0xf]
        %v362 = vld [vmem:[#allocation7 + $0x1c] sm:$0xf]
        %v363 = vld [vmem:[#allocation7 + $0x20] sm:$0xf]
        %v364 = vld [vmem:[#allocation7 + $0x24] sm:$0xf]
        %v365 = vld [vmem:[#allocation7 + $0x28] sm:$0xf]
        %v366 = vld [vmem:[#allocation7 + $0x2c] sm:$0xf]
        %v367 = vld [vmem:[#allocation7 + $0x30] sm:$0xf]
        %v368 = vld [vmem:[#allocation7 + $0x34] sm:$0xf]
        %v369 = vld [vmem:[#allocation7 + $0x38] sm:$0xf]
        %v370 = vld [vmem:[#allocation7 + $0x3c] sm:$0xf]
        %v371 = vld [vmem:[%s2] sm:$0x1]
        %v372 = vld [vmem:[%s273] sm:$0xff]
        %v373 = vld [vmem:[%s273 + $0x8] sm:$0xff]
        %v374 = vld [vmem:[%s273 + $0x10] sm:$0xff]
        %v375 = vld [vmem:[%s273 + $0x18] sm:$0xff]
        %v376 = vld [vmem:[%s273 + $0x20] sm:$0xff]
        %v377 = vld [vmem:[%s273 + $0x28] sm:$0xff]
        %v378 = vld [vmem:[%s273 + $0x30] sm:$0xff]
        %v379 = vld [vmem:[%s273 + $0x38] sm:$0xff]
        %v380 = vld [vmem:[%s273 + $0x40] sm:$0xff]
        %v381 = vld [vmem:[%s273 + $0x48] sm:$0xff]
        %v382 = vld [vmem:[%s273 + $0x50] sm:$0xff]
        %v383 = vld [vmem:[%s273 + $0x58] sm:$0xff]
        %v384 = vld [vmem:[%s273 + $0x60] sm:$0xff]
        %v385 = vld [vmem:[%s273 + $0x68] sm:$0xff]
        %v386 = vld [vmem:[%s273 + $0x70] sm:$0xff]
        %v387 = vld [vmem:[%s273 + $0x78] sm:$0xff]
        %v388 = vld [vmem:[%s273 + $0x80] sm:$0xff]
        %v389 = vld [vmem:[%s273 + $0x88] sm:$0xff]
        %v390 = vld [vmem:[%s273 + $0x90] sm:$0xff]
        %v391 = vld [vmem:[%s273 + $0x98] sm:$0xff]
        %v392 = vld [vmem:[%s273 + $0xa0] sm:$0xff]
        %v393 = vld [vmem:[%s273 + $0xa8] sm:$0xff]
        %v394 = vld [vmem:[%s273 + $0xb0] sm:$0xff]
        %v395 = vld [vmem:[%s273 + $0xb8] sm:$0xff]
        %v396 = vld [vmem:[%s273 + $0xc0] sm:$0xff]
        %v397 = vld [vmem:[%s273 + $0xc8] sm:$0xff]
        %v398 = vld [vmem:[%s273 + $0xd0] sm:$0xff]
        %v399 = vld [vmem:[%s273 + $0xd8] sm:$0xff]
        %v400 = vld [vmem:[%s273 + $0xe0] sm:$0xff]
        %v401 = vld [vmem:[%s273 + $0xe8] sm:$0xff]
        %v402 = vld [vmem:[%s273 + $0xf0] sm:$0xff]
        %v403 = vld [vmem:[%s273 + $0xf8] sm:$0xff]
        %v404 = vpack.c.bf16 %v373, %v372
        %v405 = vpack.c.bf16 %v375, %v374
        %v406 = vpack.c.bf16 %v377, %v376
        %v407 = vpack.c.bf16 %v379, %v378
        %v408 = vpack.c.bf16 %v381, %v380
        %v409 = vpack.c.bf16 %v383, %v382
        %v410 = vpack.c.bf16 %v385, %v384
        %v411 = vpack.c.bf16 %v387, %v386
        %v412 = vpack.c.bf16 %v389, %v388
        %v413 = vpack.c.bf16 %v391, %v390
        %v414 = vpack.c.bf16 %v393, %v392
        %v415 = vpack.c.bf16 %v395, %v394
        %v416 = vpack.c.bf16 %v397, %v396
        %v417 = vpack.c.bf16 %v399, %v398
        %v418 = vpack.c.bf16 %v401, %v400
        %v419 = vpack.c.bf16 %v403, %v402
        %v421 = vlaneseq
        %v422 = vshrl.u32 %v421, 7
        %v423 = vsub.s32 0, %v422
        %v424 = vrot.slane %v371, %v423
        %v442 = vunpack.c.l.b16 %v355
        %v443 = vunpack.c.l.b16 %v356
        %v444 = vunpack.c.l.b16 %v357
        %v445 = vunpack.c.l.b16 %v358
        %v446 = vunpack.c.l.b16 %v359
        %v447 = vunpack.c.l.b16 %v360
        %v448 = vunpack.c.l.b16 %v361
        %v449 = vunpack.c.l.b16 %v362
        %v450 = vunpack.c.l.b16 %v363
        %v451 = vunpack.c.l.b16 %v364
        %v452 = vunpack.c.l.b16 %v365
        %v453 = vunpack.c.l.b16 %v366
        %v454 = vunpack.c.l.b16 %v367
        %v455 = vunpack.c.l.b16 %v368
        %v456 = vunpack.c.l.b16 %v369
        %v457 = vunpack.c.l.b16 %v370
        %v458 = vpack.c.b16 %v443, %v442
        %v459 = vpack.c.b16 %v445, %v444
        %v460 = vpack.c.b16 %v447, %v446
        %v461 = vpack.c.b16 %v449, %v448
        %v462 = vpack.c.b16 %v451, %v450
        %v463 = vpack.c.b16 %v453, %v452
        %v464 = vpack.c.b16 %v455, %v454
        %v465 = vpack.c.b16 %v457, %v456
        %474 = vmatprep.subr.bf16.mxu0 0
        %475 = vmatpush1.bf16.msra.mxu0 %v458
        %476 = vmatprep.subr.bf16.mxu0 0
        %477 = vmatpush1.bf16.msra.mxu0 %v459
        %478 = vmatprep.subr.bf16.mxu0 0
        %479 = vmatpush1.bf16.msra.mxu0 %v460
        %480 = vmatprep.subr.bf16.mxu0 0
        %481 = vmatpush1.bf16.msra.mxu0 %v461
        %482 = vmatprep.subr.bf16.mxu0 0
        %483 = vmatpush1.bf16.msra.mxu0 %v462
        %484 = vmatprep.subr.bf16.mxu0 0
        %485 = vmatpush1.bf16.msra.mxu0 %v463
        %486 = vmatprep.subr.bf16.mxu0 0
        %487 = vmatpush1.bf16.msra.mxu0 %v464
        %488 = vmatprep.subr.bf16.mxu0 0
        %489 = vmatpush1.bf16.msra.mxu0 %v465
        %490 = vmatprep.subr.bf16.mxu0 0
        %491 = vmatpush1.bf16.msra.mxu0 0
        %492 = vmatprep.subr.bf16.mxu0 0
        %493 = vmatpush1.bf16.msra.mxu0 0
        %494 = vmatprep.subr.bf16.mxu0 0
        %495 = vmatpush1.bf16.msra.mxu0 0
        %496 = vmatprep.subr.bf16.mxu0 0
        %497 = vmatpush1.bf16.msra.mxu0 0
        %498 = vmatprep.subr.bf16.mxu0 0
        %499 = vmatpush1.bf16.msra.mxu0 0
        %500 = vmatprep.subr.bf16.mxu0 0
        %501 = vmatpush1.bf16.msra.mxu0 0
        %502 = vmatprep.subr.bf16.mxu0 0
        %503 = vmatpush1.bf16.msra.mxu0 0
        %504 = vmatprep.subr.bf16.mxu0 0
        %505 = vmatpush1.bf16.msra.mxu0 0
        %506 = vmatprep.mubr.bf16.mxu0 0
        %507 = vmatmul.mubr.bf16.gmra.mrb[0].mxu0 %v404
        %v508 = vpop.f32.mrb[0].mxu0
        %v509 = vadd.f32 %v424, %v508
        %v510 = vpop.f32.mrb[0].mxu0
        %v511 = vpop.f32.mrb[0].mxu0
        %v512 = vadd.f32 %v424, %v511
        %v513 = vpop.f32.mrb[0].mxu0
        %514 = vmatprep.mubr.bf16.mxu0 0
        %515 = vmatmul.mubr.bf16.gmra.mrb[0].mxu0 %v405
        %v516 = vpop.f32.mrb[0].mxu0
        %v517 = vadd.f32 %v424, %v516
        %v518 = vpop.f32.mrb[0].mxu0
        %v519 = vpop.f32.mrb[0].mxu0
        %v520 = vadd.f32 %v424, %v519
        %v521 = vpop.f32.mrb[0].mxu0
        %522 = vmatprep.mubr.bf16.mxu0 0
        %523 = vmatmul.mubr.bf16.gmra.mrb[0].mxu0 %v406
        %v524 = vpop.f32.mrb[0].mxu0
        %v525 = vadd.f32 %v424, %v524
        %v526 = vpop.f32.mrb[0].mxu0
        %v527 = vpop.f32.mrb[0].mxu0
        %v528 = vadd.f32 %v424, %v527
        %v529 = vpop.f32.mrb[0].mxu0
        %530 = vmatprep.mubr.bf16.mxu0 0
        %531 = vmatmul.mubr.bf16.gmra.mrb[0].mxu0 %v407
        %v532 = vpop.f32.mrb[0].mxu0
        %v533 = vadd.f32 %v424, %v532
        %v534 = vpop.f32.mrb[0].mxu0
        %v535 = vpop.f32.mrb[0].mxu0
        %v536 = vadd.f32 %v424, %v535
        %v537 = vpop.f32.mrb[0].mxu0
        %538 = vmatprep.mubr.bf16.mxu0 0
        %539 = vmatmul.mubr.bf16.gmra.mrb[0].mxu0 %v408
        %v540 = vpop.f32.mrb[0].mxu0
        %v541 = vadd.f32 %v424, %v540
        %v542 = vpop.f32.mrb[0].mxu0
        %v543 = vpop.f32.mrb[0].mxu0
        %v544 = vadd.f32 %v424, %v543
        %v545 = vpop.f32.mrb[0].mxu0
        %546 = vmatprep.mubr.bf16.mxu0 0
        %547 = vmatmul.mubr.bf16.gmra.mrb[0].mxu0 %v409
        %v548 = vpop.f32.mrb[0].mxu0
        %v549 = vadd.f32 %v424, %v548
        %v550 = vpop.f32.mrb[0].mxu0
        %v551 = vpop.f32.mrb[0].mxu0
        %v552 = vadd.f32 %v424, %v551
        %v553 = vpop.f32.mrb[0].mxu0
        %554 = vmatprep.mubr.bf16.mxu0 0
        %555 = vmatmul.mubr.bf16.gmra.mrb[0].mxu0 %v410
        %v556 = vpop.f32.mrb[0].mxu0
        %v557 = vadd.f32 %v424, %v556
        %v558 = vpop.f32.mrb[0].mxu0
        %v559 = vpop.f32.mrb[0].mxu0
        %v560 = vadd.f32 %v424, %v559
        %v561 = vpop.f32.mrb[0].mxu0
        %562 = vmatprep.mubr.bf16.mxu0 0
        %563 = vmatmul.mubr.bf16.gmra.mrb[0].mxu0 %v411
        %v564 = vpop.f32.mrb[0].mxu0
        %v565 = vadd.f32 %v424, %v564
        %v566 = vpop.f32.mrb[0].mxu0
        %v567 = vpop.f32.mrb[0].mxu0
        %v568 = vadd.f32 %v424, %v567
        %v569 = vpop.f32.mrb[0].mxu0
        %570 = vmatprep.mubr.bf16.mxu0 0
        %571 = vmatmul.mubr.bf16.gmra.mrb[0].mxu0 %v412
        %v572 = vpop.f32.mrb[0].mxu0
        %v573 = vadd.f32 %v424, %v572
        %v574 = vpop.f32.mrb[0].mxu0
        %v575 = vpop.f32.mrb[0].mxu0
        %v576 = vadd.f32 %v424, %v575
        %v577 = vpop.f32.mrb[0].mxu0
        %578 = vmatprep.mubr.bf16.mxu0 0
        %579 = vmatmul.mubr.bf16.gmra.mrb[0].mxu0 %v413
        %v580 = vpop.f32.mrb[0].mxu0
        %v581 = vadd.f32 %v424, %v580
        %v582 = vpop.f32.mrb[0].mxu0
        %v583 = vpop.f32.mrb[0].mxu0
        %v584 = vadd.f32 %v424, %v583
        %v585 = vpop.f32.mrb[0].mxu0
        %586 = vmatprep.mubr.bf16.mxu0 0
        %587 = vmatmul.mubr.bf16.gmra.mrb[0].mxu0 %v414
        %v588 = vpop.f32.mrb[0].mxu0
        %v589 = vadd.f32 %v424, %v588
        %v590 = vpop.f32.mrb[0].mxu0
        %v591 = vpop.f32.mrb[0].mxu0
        %v592 = vadd.f32 %v424, %v591
        %v593 = vpop.f32.mrb[0].mxu0
        %594 = vmatprep.mubr.bf16.mxu0 0
        %595 = vmatmul.mubr.bf16.gmra.mrb[0].mxu0 %v415
        %v596 = vpop.f32.mrb[0].mxu0
        %v597 = vadd.f32 %v424, %v596
        %v598 = vpop.f32.mrb[0].mxu0
        %v599 = vpop.f32.mrb[0].mxu0
        %v600 = vadd.f32 %v424, %v599
        %v601 = vpop.f32.mrb[0].mxu0
        %602 = vmatprep.mubr.bf16.mxu0 0
        %603 = vmatmul.mubr.bf16.gmra.mrb[0].mxu0 %v416
        %v604 = vpop.f32.mrb[0].mxu0
        %v605 = vadd.f32 %v424, %v604
        %v606 = vpop.f32.mrb[0].mxu0
        %v607 = vpop.f32.mrb[0].mxu0
        %v608 = vadd.f32 %v424, %v607
        %v609 = vpop.f32.mrb[0].mxu0
        %610 = vmatprep.mubr.bf16.mxu0 0
        %611 = vmatmul.mubr.bf16.gmra.mrb[0].mxu0 %v417
        %v612 = vpop.f32.mrb[0].mxu0
        %v613 = vadd.f32 %v424, %v612
        %v614 = vpop.f32.mrb[0].mxu0
        %v615 = vpop.f32.mrb[0].mxu0
        %v616 = vadd.f32 %v424, %v615
        %v617 = vpop.f32.mrb[0].mxu0
        %618 = vmatprep.mubr.bf16.mxu0 0
        %619 = vmatmul.mubr.bf16.gmra.mrb[0].mxu0 %v418
        %v620 = vpop.f32.mrb[0].mxu0
        %v621 = vadd.f32 %v424, %v620
        %v622 = vpop.f32.mrb[0].mxu0
        %v623 = vpop.f32.mrb[0].mxu0
        %v624 = vadd.f32 %v424, %v623
        %v625 = vpop.f32.mrb[0].mxu0
        %626 = vmatprep.mubr.bf16.mxu0 0
        %627 = vmatmul.mubr.bf16.gmra.mrb[0].mxu0 %v419
        %v628 = vpop.f32.mrb[0].mxu0
        %v629 = vadd.f32 %v424, %v628
        %v630 = vpop.f32.mrb[0].mxu0
        %v631 = vpop.f32.mrb[0].mxu0
        %v632 = vadd.f32 %v424, %v631
        %v633 = vpop.f32.mrb[0].mxu0
        %634 = vdwg.mxu0
        %v635 = vmax.f32 %v509, 0.0
        %v636 = vmax.f32 %v512, 0.0
        %v637 = vmax.f32 %v517, 0.0
        %v638 = vmax.f32 %v520, 0.0
        %v639 = vmax.f32 %v525, 0.0
        %v640 = vmax.f32 %v528, 0.0
        %v641 = vmax.f32 %v533, 0.0
        %v642 = vmax.f32 %v536, 0.0
        %v643 = vmax.f32 %v541, 0.0
        %v644 = vmax.f32 %v544, 0.0
        %v645 = vmax.f32 %v549, 0.0
        %v646 = vmax.f32 %v552, 0.0
        %v647 = vmax.f32 %v557, 0.0
        %v648 = vmax.f32 %v560, 0.0
        %v649 = vmax.f32 %v565, 0.0
        %v650 = vmax.f32 %v568, 0.0
        %v651 = vmax.f32 %v573, 0.0
        %v652 = vmax.f32 %v576, 0.0
        %v653 = vmax.f32 %v581, 0.0
        %v654 = vmax.f32 %v584, 0.0
        %v655 = vmax.f32 %v589, 0.0
        %v656 = vmax.f32 %v592, 0.0
        %v657 = vmax.f32 %v597, 0.0
        %v658 = vmax.f32 %v600, 0.0
        %v659 = vmax.f32 %v605, 0.0
        %v660 = vmax.f32 %v608, 0.0
        %v661 = vmax.f32 %v613, 0.0
        %v662 = vmax.f32 %v616, 0.0
        %v663 = vmax.f32 %v621, 0.0
        %v664 = vmax.f32 %v624, 0.0
        %v665 = vmax.f32 %v629, 0.0
        %v666 = vmax.f32 %v632, 0.0
        %667 = vst [vmem:[%s322 + $0x8] sm:$0xff] %v635
        %668 = vst [vmem:[%s322 + $0x10] sm:$0xff] %v636
        %669 = vst [vmem:[%s322 + $0x28] sm:$0xff] %v637
        %670 = vst [vmem:[%s322 + $0x30] sm:$0xff] %v638
        %671 = vst [vmem:[%s322 + $0x48] sm:$0xff] %v639
        %672 = vst [vmem:[%s322 + $0x50] sm:$0xff] %v640
        %673 = vst [vmem:[%s322 + $0x68] sm:$0xff] %v641
        %674 = vst [vmem:[%s322 + $0x70] sm:$0xff] %v642
        %675 = vst [vmem:[%s322 + $0x88] sm:$0xff] %v643
        %676 = vst [vmem:[%s322 + $0x90] sm:$0xff] %v644
        %677 = vst [vmem:[%s322 + $0xa8] sm:$0xff] %v645
        %678 = vst [vmem:[%s322 + $0xb0] sm:$0xff] %v646
        %679 = vst [vmem:[%s322 + $0xc8] sm:$0xff] %v647
        %680 = vst [vmem:[%s322 + $0xd0] sm:$0xff] %v648
        %681 = vst [vmem:[%s322 + $0xe8] sm:$0xff] %v649
        %682 = vst [vmem:[%s322 + $0xf0] sm:$0xff] %v650
        %683 = vst [vmem:[%s322 + $0x108] sm:$0xff] %v651
        %684 = vst [vmem:[%s322 + $0x110] sm:$0xff] %v652
        %685 = vst [vmem:[%s322 + $0x128] sm:$0xff] %v653
        %686 = vst [vmem:[%s322 + $0x130] sm:$0xff] %v654
        %687 = vst [vmem:[%s322 + $0x148] sm:$0xff] %v655
        %688 = vst [vmem:[%s322 + $0x150] sm:$0xff] %v656
        %689 = vst [vmem:[%s322 + $0x168] sm:$0xff] %v657
        %690 = vst [vmem:[%s322 + $0x170] sm:$0xff] %v658
        %691 = vst [vmem:[%s322 + $0x188] sm:$0xff] %v659
        %692 = vst [vmem:[%s322 + $0x190] sm:$0xff] %v660
        %693 = vst [vmem:[%s322 + $0x1a8] sm:$0xff] %v661
        %694 = vst [vmem:[%s322 + $0x1b0] sm:$0xff] %v662
        %695 = vst [vmem:[%s322 + $0x1c8] sm:$0xff] %v663
        %696 = vst [vmem:[%s322 + $0x1d0] sm:$0xff] %v664
        %697 = vst [vmem:[%s322 + $0x1e8] sm:$0xff] %v665
        %698 = vst [vmem:[%s322 + $0x1f0] sm:$0xff] %v666
        %v699 = vld [vmem:[#allocation9] sm:$0xff]
        %v700 = vld [vmem:[#allocation9 + $0x8] sm:$0x1]
        %v701 = vld [vmem:[#allocation2 + $0x7] sm:$0xff]
        %v702 = vld [vmem:[#allocation2 + $0xf] sm:$0xff]
        %v703 = vld [vmem:[#allocation2 + $0x27] sm:$0xff]
        %v704 = vld [vmem:[#allocation2 + $0x2f] sm:$0xff]
        %v705 = vld [vmem:[#allocation2 + $0x47] sm:$0xff]
        %v706 = vld [vmem:[#allocation2 + $0x4f] sm:$0xff]
        %v707 = vld [vmem:[#allocation2 + $0x67] sm:$0xff]
        %v708 = vld [vmem:[#allocation2 + $0x6f] sm:$0xff]
        %v709 = vld [vmem:[#allocation2 + $0x87] sm:$0xff]
        %v710 = vld [vmem:[#allocation2 + $0x8f] sm:$0xff]
        %v711 = vld [vmem:[#allocation2 + $0xa7] sm:$0xff]
        %v712 = vld [vmem:[#allocation2 + $0xaf] sm:$0xff]
        %v713 = vld [vmem:[#allocation2 + $0xc7] sm:$0xff]
        %v714 = vld [vmem:[#allocation2 + $0xcf] sm:$0xff]
        %v715 = vld [vmem:[#allocation2 + $0xe7] sm:$0xff]
        %v716 = vld [vmem:[#allocation2 + $0xef] sm:$0xff]
        %v717 = vlaneseq
        %v718 = vshrl.u32 %v717, 7
        %v719 = vsub.s32 0, %v718
        %v720 = vrot.slane %v699, %v719
        %v721 = vmul.f32 %v701, %v720
        %v722 = vmul.f32 %v702, %v720
        %v723 = vmul.f32 %v703, %v720
        %v724 = vmul.f32 %v704, %v720
        %v725 = vmul.f32 %v705, %v720
        %v726 = vmul.f32 %v706, %v720
        %v727 = vmul.f32 %v707, %v720
        %v728 = vmul.f32 %v708, %v720
        %v729 = vmul.f32 %v709, %v720
        %v730 = vmul.f32 %v710, %v720
        %v731 = vmul.f32 %v711, %v720
        %v732 = vmul.f32 %v712, %v720
        %v733 = vmul.f32 %v713, %v720
        %v734 = vmul.f32 %v714, %v720
        %v735 = vmul.f32 %v715, %v720
        %v736 = vmul.f32 %v716, %v720
        %v737 = vld [vmem:[#allocation2 + $0x8] sm:$0xff]
        %v738 = vld [vmem:[#allocation2 + $0x10] sm:$0xff]
        %v739 = vld [vmem:[#allocation2 + $0x28] sm:$0xff]
        %v740 = vld [vmem:[#allocation2 + $0x30] sm:$0xff]
        %v741 = vld [vmem:[#allocation2 + $0x48] sm:$0xff]
        %v742 = vld [vmem:[#allocation2 + $0x50] sm:$0xff]
        %v743 = vld [vmem:[#allocation2 + $0x68] sm:$0xff]
        %v744 = vld [vmem:[#allocation2 + $0x70] sm:$0xff]
        %v745 = vld [vmem:[#allocation2 + $0x88] sm:$0xff]
        %v746 = vld [vmem:[#allocation2 + $0x90] sm:$0xff]
        %v747 = vld [vmem:[#allocation2 + $0xa8] sm:$0xff]
        %v748 = vld [vmem:[#allocation2 + $0xb0] sm:$0xff]
        %v749 = vld [vmem:[#allocation2 + $0xc8] sm:$0xff]
        %v750 = vld [vmem:[#allocation2 + $0xd0] sm:$0xff]
        %v751 = vld [vmem:[#allocation2 + $0xe8] sm:$0xff]
        %v752 = vld [vmem:[#allocation2 + $0xf0] sm:$0xff]
        %v753 = vlaneseq
        %v754 = vshrl.u32 %v753, 7
        %v755 = vsub.s32 1, %v754
        %v756 = vrot.slane %v699, %v755
        %v757 = vmul.f32 %v737, %v756
        %v758 = vmul.f32 %v738, %v756
        %v759 = vmul.f32 %v739, %v756
        %v760 = vmul.f32 %v740, %v756
        %v761 = vmul.f32 %v741, %v756
        %v762 = vmul.f32 %v742, %v756
        %v763 = vmul.f32 %v743, %v756
        %v764 = vmul.f32 %v744, %v756
        %v765 = vmul.f32 %v745, %v756
        %v766 = vmul.f32 %v746, %v756
        %v767 = vmul.f32 %v747, %v756
        %v768 = vmul.f32 %v748, %v756
        %v769 = vmul.f32 %v749, %v756
        %v770 = vmul.f32 %v750, %v756
        %v771 = vmul.f32 %v751, %v756
        %v772 = vmul.f32 %v752, %v756
        %v773 = vadd.f32 %v721, %v757
        %v774 = vadd.f32 %v722, %v758
        %v775 = vadd.f32 %v723, %v759
        %v776 = vadd.f32 %v724, %v760
        %v777 = vadd.f32 %v725, %v761
        %v778 = vadd.f32 %v726, %v762
        %v779 = vadd.f32 %v727, %v763
        %v780 = vadd.f32 %v728, %v764
        %v781 = vadd.f32 %v729, %v765
        %v782 = vadd.f32 %v730, %v766
        %v783 = vadd.f32 %v731, %v767
        %v784 = vadd.f32 %v732, %v768
        %v785 = vadd.f32 %v733, %v769
        %v786 = vadd.f32 %v734, %v770
        %v787 = vadd.f32 %v735, %v771
        %v788 = vadd.f32 %v736, %v772
        %v789 = vld [vmem:[#allocation2 + $0x9] sm:$0xff]
        %v790 = vld [vmem:[#allocation2 + $0x11] sm:$0xff]
        %v791 = vld [vmem:[#allocation2 + $0x29] sm:$0xff]
        %v792 = vld [vmem:[#allocation2 + $0x31] sm:$0xff]
        %v793 = vld [vmem:[#allocation2 + $0x49] sm:$0xff]
        %v794 = vld [vmem:[#allocation2 + $0x51] sm:$0xff]
        %v795 = vld [vmem:[#allocation2 + $0x69] sm:$0xff]
        %v796 = vld [vmem:[#allocation2 + $0x71] sm:$0xff]
        %v797 = vld [vmem:[#allocation2 + $0x89] sm:$0xff]
        %v798 = vld [vmem:[#allocation2 + $0x91] sm:$0xff]
        %v799 = vld [vmem:[#allocation2 + $0xa9] sm:$0xff]
        %v800 = vld [vmem:[#allocation2 + $0xb1] sm:$0xff]
        %v801 = vld [vmem:[#allocation2 + $0xc9] sm:$0xff]
        %v802 = vld [vmem:[#allocation2 + $0xd1] sm:$0xff]
        %v803 = vld [vmem:[#allocation2 + $0xe9] sm:$0xff]
        %v804 = vld [vmem:[#allocation2 + $0xf1] sm:$0xff]
        %v805 = vlaneseq
        %v806 = vshrl.u32 %v805, 7
        %v807 = vsub.s32 2, %v806
        %v808 = vrot.slane %v699, %v807
        %v809 = vmul.f32 %v789, %v808
        %v810 = vmul.f32 %v790, %v808
        %v811 = vmul.f32 %v791, %v808
        %v812 = vmul.f32 %v792, %v808
        %v813 = vmul.f32 %v793, %v808
        %v814 = vmul.f32 %v794, %v808
        %v815 = vmul.f32 %v795, %v808
        %v816 = vmul.f32 %v796, %v808
        %v817 = vmul.f32 %v797, %v808
        %v818 = vmul.f32 %v798, %v808
        %v819 = vmul.f32 %v799, %v808
        %v820 = vmul.f32 %v800, %v808
        %v821 = vmul.f32 %v801, %v808
        %v822 = vmul.f32 %v802, %v808
        %v823 = vmul.f32 %v803, %v808
        %v824 = vmul.f32 %v804, %v808
        %v825 = vadd.f32 %v773, %v809
        %v826 = vadd.f32 %v774, %v810
        %v827 = vadd.f32 %v775, %v811
        %v828 = vadd.f32 %v776, %v812
        %v829 = vadd.f32 %v777, %v813
        %v830 = vadd.f32 %v778, %v814
        %v831 = vadd.f32 %v779, %v815
        %v832 = vadd.f32 %v780, %v816
        %v833 = vadd.f32 %v781, %v817
        %v834 = vadd.f32 %v782, %v818
        %v835 = vadd.f32 %v783, %v819
        %v836 = vadd.f32 %v784, %v820
        %v837 = vadd.f32 %v785, %v821
        %v838 = vadd.f32 %v786, %v822
        %v839 = vadd.f32 %v787, %v823
        %v840 = vadd.f32 %v788, %v824
        %v841 = vld [vmem:[%s322 + $0x7] sm:$0xff]
        %v842 = vld [vmem:[%s322 + $0xf] sm:$0xff]
        %v843 = vld [vmem:[%s322 + $0x27] sm:$0xff]
        %v844 = vld [vmem:[%s322 + $0x2f] sm:$0xff]
        %v845 = vld [vmem:[%s322 + $0x47] sm:$0xff]
        %v846 = vld [vmem:[%s322 + $0x4f] sm:$0xff]
        %v847 = vld [vmem:[%s322 + $0x67] sm:$0xff]
        %v848 = vld [vmem:[%s322 + $0x6f] sm:$0xff]
        %v849 = vld [vmem:[%s322 + $0x87] sm:$0xff]
        %v850 = vld [vmem:[%s322 + $0x8f] sm:$0xff]
        %v851 = vld [vmem:[%s322 + $0xa7] sm:$0xff]
        %v852 = vld [vmem:[%s322 + $0xaf] sm:$0xff]
        %v853 = vld [vmem:[%s322 + $0xc7] sm:$0xff]
        %v854 = vld [vmem:[%s322 + $0xcf] sm:$0xff]
        %v855 = vld [vmem:[%s322 + $0xe7] sm:$0xff]
        %v856 = vld [vmem:[%s322 + $0xef] sm:$0xff]
        %v857 = vlaneseq
        %v858 = vshrl.u32 %v857, 7
        %v859 = vsub.s32 3, %v858
        %v860 = vrot.slane %v699, %v859
        %v861 = vmul.f32 %v841, %v860
        %v862 = vmul.f32 %v842, %v860
        %v863 = vmul.f32 %v843, %v860
        %v864 = vmul.f32 %v844, %v860
        %v865 = vmul.f32 %v845, %v860
        %v866 = vmul.f32 %v846, %v860
        %v867 = vmul.f32 %v847, %v860
        %v868 = vmul.f32 %v848, %v860
        %v869 = vmul.f32 %v849, %v860
        %v870 = vmul.f32 %v850, %v860
        %v871 = vmul.f32 %v851, %v860
        %v872 = vmul.f32 %v852, %v860
        %v873 = vmul.f32 %v853, %v860
        %v874 = vmul.f32 %v854, %v860
        %v875 = vmul.f32 %v855, %v860
        %v876 = vmul.f32 %v856, %v860
        %v877 = vadd.f32 %v825, %v861
        %v878 = vadd.f32 %v826, %v862
        %v879 = vadd.f32 %v827, %v863
        %v880 = vadd.f32 %v828, %v864
        %v881 = vadd.f32 %v829, %v865
        %v882 = vadd.f32 %v830, %v866
        %v883 = vadd.f32 %v831, %v867
        %v884 = vadd.f32 %v832, %v868
        %v885 = vadd.f32 %v833, %v869
        %v886 = vadd.f32 %v834, %v870
        %v887 = vadd.f32 %v835, %v871
        %v888 = vadd.f32 %v836, %v872
        %v889 = vadd.f32 %v837, %v873
        %v890 = vadd.f32 %v838, %v874
        %v891 = vadd.f32 %v839, %v875
        %v892 = vadd.f32 %v840, %v876
        %v893 = vld [vmem:[%s322 + $0x8] sm:$0xff]
        %v894 = vld [vmem:[%s322 + $0x10] sm:$0xff]
        %v895 = vld [vmem:[%s322 + $0x28] sm:$0xff]
        %v896 = vld [vmem:[%s322 + $0x30] sm:$0xff]
        %v897 = vld [vmem:[%s322 + $0x48] sm:$0xff]
        %v898 = vld [vmem:[%s322 + $0x50] sm:$0xff]
        %v899 = vld [vmem:[%s322 + $0x68] sm:$0xff]
        %v900 = vld [vmem:[%s322 + $0x70] sm:$0xff]
        %v901 = vld [vmem:[%s322 + $0x88] sm:$0xff]
        %v902 = vld [vmem:[%s322 + $0x90] sm:$0xff]
        %v903 = vld [vmem:[%s322 + $0xa8] sm:$0xff]
        %v904 = vld [vmem:[%s322 + $0xb0] sm:$0xff]
        %v905 = vld [vmem:[%s322 + $0xc8] sm:$0xff]
        %v906 = vld [vmem:[%s322 + $0xd0] sm:$0xff]
        %v907 = vld [vmem:[%s322 + $0xe8] sm:$0xff]
        %v908 = vld [vmem:[%s322 + $0xf0] sm:$0xff]
        %v909 = vlaneseq
        %v910 = vshrl.u32 %v909, 7
        %v911 = vsub.s32 4, %v910
        %v912 = vrot.slane %v699, %v911
        %v913 = vmul.f32 %v893, %v912
        %v914 = vmul.f32 %v894, %v912
        %v915 = vmul.f32 %v895, %v912
        %v916 = vmul.f32 %v896, %v912
        %v917 = vmul.f32 %v897, %v912
        %v918 = vmul.f32 %v898, %v912
        %v919 = vmul.f32 %v899, %v912
        %v920 = vmul.f32 %v900, %v912
        %v921 = vmul.f32 %v901, %v912
        %v922 = vmul.f32 %v902, %v912
        %v923 = vmul.f32 %v903, %v912
        %v924 = vmul.f32 %v904, %v912
        %v925 = vmul.f32 %v905, %v912
        %v926 = vmul.f32 %v906, %v912
        %v927 = vmul.f32 %v907, %v912
        %v928 = vmul.f32 %v908, %v912
        %v929 = vadd.f32 %v877, %v913
        %v930 = vadd.f32 %v878, %v914
        %v931 = vadd.f32 %v879, %v915
        %v932 = vadd.f32 %v880, %v916
        %v933 = vadd.f32 %v881, %v917
        %v934 = vadd.f32 %v882, %v918
        %v935 = vadd.f32 %v883, %v919
        %v936 = vadd.f32 %v884, %v920
        %v937 = vadd.f32 %v885, %v921
        %v938 = vadd.f32 %v886, %v922
        %v939 = vadd.f32 %v887, %v923
        %v940 = vadd.f32 %v888, %v924
        %v941 = vadd.f32 %v889, %v925
        %v942 = vadd.f32 %v890, %v926
        %v943 = vadd.f32 %v891, %v927
        %v944 = vadd.f32 %v892, %v928
        %v945 = vld [vmem:[%s322 + $0x9] sm:$0xff]
        %v946 = vld [vmem:[%s322 + $0x11] sm:$0xff]
        %v947 = vld [vmem:[%s322 + $0x29] sm:$0xff]
        %v948 = vld [vmem:[%s322 + $0x31] sm:$0xff]
        %v949 = vld [vmem:[%s322 + $0x49] sm:$0xff]
        %v950 = vld [vmem:[%s322 + $0x51] sm:$0xff]
        %v951 = vld [vmem:[%s322 + $0x69] sm:$0xff]
        %v952 = vld [vmem:[%s322 + $0x71] sm:$0xff]
        %v953 = vld [vmem:[%s322 + $0x89] sm:$0xff]
        %v954 = vld [vmem:[%s322 + $0x91] sm:$0xff]
        %v955 = vld [vmem:[%s322 + $0xa9] sm:$0xff]
        %v956 = vld [vmem:[%s322 + $0xb1] sm:$0xff]
        %v957 = vld [vmem:[%s322 + $0xc9] sm:$0xff]
        %v958 = vld [vmem:[%s322 + $0xd1] sm:$0xff]
        %v959 = vld [vmem:[%s322 + $0xe9] sm:$0xff]
        %v960 = vld [vmem:[%s322 + $0xf1] sm:$0xff]
        %v961 = vlaneseq
        %v962 = vshrl.u32 %v961, 7
        %v963 = vsub.s32 5, %v962
        %v964 = vrot.slane %v699, %v963
        %v965 = vmul.f32 %v945, %v964
        %v966 = vmul.f32 %v946, %v964
        %v967 = vmul.f32 %v947, %v964
        %v968 = vmul.f32 %v948, %v964
        %v969 = vmul.f32 %v949, %v964
        %v970 = vmul.f32 %v950, %v964
        %v971 = vmul.f32 %v951, %v964
        %v972 = vmul.f32 %v952, %v964
        %v973 = vmul.f32 %v953, %v964
        %v974 = vmul.f32 %v954, %v964
        %v975 = vmul.f32 %v955, %v964
        %v976 = vmul.f32 %v956, %v964
        %v977 = vmul.f32 %v957, %v964
        %v978 = vmul.f32 %v958, %v964
        %v979 = vmul.f32 %v959, %v964
        %v980 = vmul.f32 %v960, %v964
        %v981 = vadd.f32 %v929, %v965
        %v982 = vadd.f32 %v930, %v966
        %v983 = vadd.f32 %v931, %v967
        %v984 = vadd.f32 %v932, %v968
        %v985 = vadd.f32 %v933, %v969
        %v986 = vadd.f32 %v934, %v970
        %v987 = vadd.f32 %v935, %v971
        %v988 = vadd.f32 %v936, %v972
        %v989 = vadd.f32 %v937, %v973
        %v990 = vadd.f32 %v938, %v974
        %v991 = vadd.f32 %v939, %v975
        %v992 = vadd.f32 %v940, %v976
        %v993 = vadd.f32 %v941, %v977
        %v994 = vadd.f32 %v942, %v978
        %v995 = vadd.f32 %v943, %v979
        %v996 = vadd.f32 %v944, %v980
        %s997 = scalar_lea.vmem [#allocation2], 64
        %v998 = vld [vmem:[%s997 + $0x7] sm:$0xff]
        %v999 = vld [vmem:[%s997 + $0xf] sm:$0xff]
        %v1000 = vld [vmem:[%s997 + $0x27] sm:$0xff]
        %v1001 = vld [vmem:[%s997 + $0x2f] sm:$0xff]
        %v1002 = vld [vmem:[%s997 + $0x47] sm:$0xff]
        %v1003 = vld [vmem:[%s997 + $0x4f] sm:$0xff]
        %v1004 = vld [vmem:[%s997 + $0x67] sm:$0xff]
        %v1005 = vld [vmem:[%s997 + $0x6f] sm:$0xff]
        %v1006 = vld [vmem:[%s997 + $0x87] sm:$0xff]
        %v1007 = vld [vmem:[%s997 + $0x8f] sm:$0xff]
        %v1008 = vld [vmem:[%s997 + $0xa7] sm:$0xff]
        %v1009 = vld [vmem:[%s997 + $0xaf] sm:$0xff]
        %v1010 = vld [vmem:[%s997 + $0xc7] sm:$0xff]
        %v1011 = vld [vmem:[%s997 + $0xcf] sm:$0xff]
        %v1012 = vld [vmem:[%s997 + $0xe7] sm:$0xff]
        %v1013 = vld [vmem:[%s997 + $0xef] sm:$0xff]
        %v1014 = vlaneseq
        %v1015 = vshrl.u32 %v1014, 7
        %v1016 = vsub.s32 6, %v1015
        %v1017 = vrot.slane %v699, %v1016
        %v1018 = vmul.f32 %v998, %v1017
        %v1019 = vmul.f32 %v999, %v1017
        %v1020 = vmul.f32 %v1000, %v1017
        %v1021 = vmul.f32 %v1001, %v1017
        %v1022 = vmul.f32 %v1002, %v1017
        %v1023 = vmul.f32 %v1003, %v1017
        %v1024 = vmul.f32 %v1004, %v1017
        %v1025 = vmul.f32 %v1005, %v1017
        %v1026 = vmul.f32 %v1006, %v1017
        %v1027 = vmul.f32 %v1007, %v1017
        %v1028 = vmul.f32 %v1008, %v1017
        %v1029 = vmul.f32 %v1009, %v1017
        %v1030 = vmul.f32 %v1010, %v1017
        %v1031 = vmul.f32 %v1011, %v1017
        %v1032 = vmul.f32 %v1012, %v1017
        %v1033 = vmul.f32 %v1013, %v1017
        %v1034 = vadd.f32 %v981, %v1018
        %v1035 = vadd.f32 %v982, %v1019
        %v1036 = vadd.f32 %v983, %v1020
        %v1037 = vadd.f32 %v984, %v1021
        %v1038 = vadd.f32 %v985, %v1022
        %v1039 = vadd.f32 %v986, %v1023
        %v1040 = vadd.f32 %v987, %v1024
        %v1041 = vadd.f32 %v988, %v1025
        %v1042 = vadd.f32 %v989, %v1026
        %v1043 = vadd.f32 %v990, %v1027
        %v1044 = vadd.f32 %v991, %v1028
        %v1045 = vadd.f32 %v992, %v1029
        %v1046 = vadd.f32 %v993, %v1030
        %v1047 = vadd.f32 %v994, %v1031
        %v1048 = vadd.f32 %v995, %v1032
        %v1049 = vadd.f32 %v996, %v1033
        %v1050 = vld [vmem:[%s997 + $0x8] sm:$0xff]
        %v1051 = vld [vmem:[%s997 + $0x10] sm:$0xff]
        %v1052 = vld [vmem:[%s997 + $0x28] sm:$0xff]
        %v1053 = vld [vmem:[%s997 + $0x30] sm:$0xff]
        %v1054 = vld [vmem:[%s997 + $0x48] sm:$0xff]
        %v1055 = vld [vmem:[%s997 + $0x50] sm:$0xff]
        %v1056 = vld [vmem:[%s997 + $0x68] sm:$0xff]
        %v1057 = vld [vmem:[%s997 + $0x70] sm:$0xff]
        %v1058 = vld [vmem:[%s997 + $0x88] sm:$0xff]
        %v1059 = vld [vmem:[%s997 + $0x90] sm:$0xff]
        %v1060 = vld [vmem:[%s997 + $0xa8] sm:$0xff]
        %v1061 = vld [vmem:[%s997 + $0xb0] sm:$0xff]
        %v1062 = vld [vmem:[%s997 + $0xc8] sm:$0xff]
        %v1063 = vld [vmem:[%s997 + $0xd0] sm:$0xff]
        %v1064 = vld [vmem:[%s997 + $0xe8] sm:$0xff]
        %v1065 = vld [vmem:[%s997 + $0xf0] sm:$0xff]
        %v1066 = vlaneseq
        %v1067 = vshrl.u32 %v1066, 7
        %v1068 = vsub.s32 7, %v1067
        %v1069 = vrot.slane %v699, %v1068
        %v1070 = vmul.f32 %v1050, %v1069
        %v1071 = vmul.f32 %v1051, %v1069
        %v1072 = vmul.f32 %v1052, %v1069
        %v1073 = vmul.f32 %v1053, %v1069
        %v1074 = vmul.f32 %v1054, %v1069
        %v1075 = vmul.f32 %v1055, %v1069
        %v1076 = vmul.f32 %v1056, %v1069
        %v1077 = vmul.f32 %v1057, %v1069
        %v1078 = vmul.f32 %v1058, %v1069
        %v1079 = vmul.f32 %v1059, %v1069
        %v1080 = vmul.f32 %v1060, %v1069
        %v1081 = vmul.f32 %v1061, %v1069
        %v1082 = vmul.f32 %v1062, %v1069
        %v1083 = vmul.f32 %v1063, %v1069
        %v1084 = vmul.f32 %v1064, %v1069
        %v1085 = vmul.f32 %v1065, %v1069
        %v1086 = vadd.f32 %v1034, %v1070
        %v1087 = vadd.f32 %v1035, %v1071
        %v1088 = vadd.f32 %v1036, %v1072
        %v1089 = vadd.f32 %v1037, %v1073
        %v1090 = vadd.f32 %v1038, %v1074
        %v1091 = vadd.f32 %v1039, %v1075
        %v1092 = vadd.f32 %v1040, %v1076
        %v1093 = vadd.f32 %v1041, %v1077
        %v1094 = vadd.f32 %v1042, %v1078
        %v1095 = vadd.f32 %v1043, %v1079
        %v1096 = vadd.f32 %v1044, %v1080
        %v1097 = vadd.f32 %v1045, %v1081
        %v1098 = vadd.f32 %v1046, %v1082
        %v1099 = vadd.f32 %v1047, %v1083
        %v1100 = vadd.f32 %v1048, %v1084
        %v1101 = vadd.f32 %v1049, %v1085
        %v1102 = vld [vmem:[%s997 + $0x9] sm:$0xff]
        %v1103 = vld [vmem:[%s997 + $0x11] sm:$0xff]
        %v1104 = vld [vmem:[%s997 + $0x29] sm:$0xff]
        %v1105 = vld [vmem:[%s997 + $0x31] sm:$0xff]
        %v1106 = vld [vmem:[%s997 + $0x49] sm:$0xff]
        %v1107 = vld [vmem:[%s997 + $0x51] sm:$0xff]
        %v1108 = vld [vmem:[%s997 + $0x69] sm:$0xff]
        %v1109 = vld [vmem:[%s997 + $0x71] sm:$0xff]
        %v1110 = vld [vmem:[%s997 + $0x89] sm:$0xff]
        %v1111 = vld [vmem:[%s997 + $0x91] sm:$0xff]
        %v1112 = vld [vmem:[%s997 + $0xa9] sm:$0xff]
        %v1113 = vld [vmem:[%s997 + $0xb1] sm:$0xff]
        %v1114 = vld [vmem:[%s997 + $0xc9] sm:$0xff]
        %v1115 = vld [vmem:[%s997 + $0xd1] sm:$0xff]
        %v1116 = vld [vmem:[%s997 + $0xe9] sm:$0xff]
        %v1117 = vld [vmem:[%s997 + $0xf1] sm:$0xff]
        %v1118 = vlaneseq
        %v1119 = vshrl.u32 %v1118, 7
        %v1120 = vsub.s32 0, %v1119
        %v1121 = vrot.slane %v700, %v1120
        %v1122 = vmul.f32 %v1102, %v1121
        %v1123 = vmul.f32 %v1103, %v1121
        %v1124 = vmul.f32 %v1104, %v1121
        %v1125 = vmul.f32 %v1105, %v1121
        %v1126 = vmul.f32 %v1106, %v1121
        %v1127 = vmul.f32 %v1107, %v1121
        %v1128 = vmul.f32 %v1108, %v1121
        %v1129 = vmul.f32 %v1109, %v1121
        %v1130 = vmul.f32 %v1110, %v1121
        %v1131 = vmul.f32 %v1111, %v1121
        %v1132 = vmul.f32 %v1112, %v1121
        %v1133 = vmul.f32 %v1113, %v1121
        %v1134 = vmul.f32 %v1114, %v1121
        %v1135 = vmul.f32 %v1115, %v1121
        %v1136 = vmul.f32 %v1116, %v1121
        %v1137 = vmul.f32 %v1117, %v1121
        %v1138 = vadd.f32 %v1086, %v1122
        %v1139 = vadd.f32 %v1087, %v1123
        %v1140 = vadd.f32 %v1088, %v1124
        %v1141 = vadd.f32 %v1089, %v1125
        %v1142 = vadd.f32 %v1090, %v1126
        %v1143 = vadd.f32 %v1091, %v1127
        %v1144 = vadd.f32 %v1092, %v1128
        %v1145 = vadd.f32 %v1093, %v1129
        %v1146 = vadd.f32 %v1094, %v1130
        %v1147 = vadd.f32 %v1095, %v1131
        %v1148 = vadd.f32 %v1096, %v1132
        %v1149 = vadd.f32 %v1097, %v1133
        %v1150 = vadd.f32 %v1098, %v1134
        %v1151 = vadd.f32 %v1099, %v1135
        %v1152 = vadd.f32 %v1100, %v1136
        %v1153 = vadd.f32 %v1101, %v1137
        %1154 = vst [vmem:[#allocation3] sm:$0xff] %v1138
        %1155 = vst [vmem:[#allocation3 + $0x8] sm:$0xff] %v1139
        %1156 = vst [vmem:[#allocation3 + $0x10] sm:$0xff] %v1140
        %1157 = vst [vmem:[#allocation3 + $0x18] sm:$0xff] %v1141
        %1158 = vst [vmem:[#allocation3 + $0x20] sm:$0xff] %v1142
        %1159 = vst [vmem:[#allocation3 + $0x28] sm:$0xff] %v1143
        %1160 = vst [vmem:[#allocation3 + $0x30] sm:$0xff] %v1144
        %1161 = vst [vmem:[#allocation3 + $0x38] sm:$0xff] %v1145
        %1162 = vst [vmem:[#allocation3 + $0x40] sm:$0xff] %v1146
        %1163 = vst [vmem:[#allocation3 + $0x48] sm:$0xff] %v1147
        %1164 = vst [vmem:[#allocation3 + $0x50] sm:$0xff] %v1148
        %1165 = vst [vmem:[#allocation3 + $0x58] sm:$0xff] %v1149
        %1166 = vst [vmem:[#allocation3 + $0x60] sm:$0xff] %v1150
        %1167 = vst [vmem:[#allocation3 + $0x68] sm:$0xff] %v1151
        %1168 = vst [vmem:[#allocation3 + $0x70] sm:$0xff] %v1152
        %1169 = vst [vmem:[#allocation3 + $0x78] sm:$0xff] %v1153
        %s1170 = scalar_lea.vmem [#allocation2], 256
        %v1171 = vld [vmem:[%s1170 + $0x7] sm:$0xff]
        %v1172 = vld [vmem:[%s1170 + $0xf] sm:$0xff]
        %v1173 = vld [vmem:[%s1170 + $0x27] sm:$0xff]
        %v1174 = vld [vmem:[%s1170 + $0x2f] sm:$0xff]
        %v1175 = vld [vmem:[%s1170 + $0x47] sm:$0xff]
        %v1176 = vld [vmem:[%s1170 + $0x4f] sm:$0xff]
        %v1177 = vld [vmem:[%s1170 + $0x67] sm:$0xff]
        %v1178 = vld [vmem:[%s1170 + $0x6f] sm:$0xff]
        %v1179 = vld [vmem:[%s1170 + $0x87] sm:$0xff]
        %v1180 = vld [vmem:[%s1170 + $0x8f] sm:$0xff]
        %v1181 = vld [vmem:[%s1170 + $0xa7] sm:$0xff]
        %v1182 = vld [vmem:[%s1170 + $0xaf] sm:$0xff]
        %v1183 = vld [vmem:[%s1170 + $0xc7] sm:$0xff]
        %v1184 = vld [vmem:[%s1170 + $0xcf] sm:$0xff]
        %v1185 = vld [vmem:[%s1170 + $0xe7] sm:$0xff]
        %v1186 = vld [vmem:[%s1170 + $0xef] sm:$0xff]
        %v1187 = vmul.f32 %v1171, %v720
        %v1188 = vmul.f32 %v1172, %v720
        %v1189 = vmul.f32 %v1173, %v720
        %v1190 = vmul.f32 %v1174, %v720
        %v1191 = vmul.f32 %v1175, %v720
        %v1192 = vmul.f32 %v1176, %v720
        %v1193 = vmul.f32 %v1177, %v720
        %v1194 = vmul.f32 %v1178, %v720
        %v1195 = vmul.f32 %v1179, %v720
        %v1196 = vmul.f32 %v1180, %v720
        %v1197 = vmul.f32 %v1181, %v720
        %v1198 = vmul.f32 %v1182, %v720
        %v1199 = vmul.f32 %v1183, %v720
        %v1200 = vmul.f32 %v1184, %v720
        %v1201 = vmul.f32 %v1185, %v720
        %v1202 = vmul.f32 %v1186, %v720
        %v1203 = vld [vmem:[%s1170 + $0x8] sm:$0xff]
        %v1204 = vld [vmem:[%s1170 + $0x10] sm:$0xff]
        %v1205 = vld [vmem:[%s1170 + $0x28] sm:$0xff]
        %v1206 = vld [vmem:[%s1170 + $0x30] sm:$0xff]
        %v1207 = vld [vmem:[%s1170 + $0x48] sm:$0xff]
        %v1208 = vld [vmem:[%s1170 + $0x50] sm:$0xff]
        %v1209 = vld [vmem:[%s1170 + $0x68] sm:$0xff]
        %v1210 = vld [vmem:[%s1170 + $0x70] sm:$0xff]
        %v1211 = vld [vmem:[%s1170 + $0x88] sm:$0xff]
        %v1212 = vld [vmem:[%s1170 + $0x90] sm:$0xff]
        %v1213 = vld [vmem:[%s1170 + $0xa8] sm:$0xff]
        %v1214 = vld [vmem:[%s1170 + $0xb0] sm:$0xff]
        %v1215 = vld [vmem:[%s1170 + $0xc8] sm:$0xff]
        %v1216 = vld [vmem:[%s1170 + $0xd0] sm:$0xff]
        %v1217 = vld [vmem:[%s1170 + $0xe8] sm:$0xff]
        %v1218 = vld [vmem:[%s1170 + $0xf0] sm:$0xff]
        %v1219 = vmul.f32 %v1203, %v756
        %v1220 = vmul.f32 %v1204, %v756
        %v1221 = vmul.f32 %v1205, %v756
        %v1222 = vmul.f32 %v1206, %v756
        %v1223 = vmul.f32 %v1207, %v756
        %v1224 = vmul.f32 %v1208, %v756
        %v1225 = vmul.f32 %v1209, %v756
        %v1226 = vmul.f32 %v1210, %v756
        %v1227 = vmul.f32 %v1211, %v756
        %v1228 = vmul.f32 %v1212, %v756
        %v1229 = vmul.f32 %v1213, %v756
        %v1230 = vmul.f32 %v1214, %v756
        %v1231 = vmul.f32 %v1215, %v756
        %v1232 = vmul.f32 %v1216, %v756
        %v1233 = vmul.f32 %v1217, %v756
        %v1234 = vmul.f32 %v1218, %v756
        %v1235 = vadd.f32 %v1187, %v1219
        %v1236 = vadd.f32 %v1188, %v1220
        %v1237 = vadd.f32 %v1189, %v1221
        %v1238 = vadd.f32 %v1190, %v1222
        %v1239 = vadd.f32 %v1191, %v1223
        %v1240 = vadd.f32 %v1192, %v1224
        %v1241 = vadd.f32 %v1193, %v1225
        %v1242 = vadd.f32 %v1194, %v1226
        %v1243 = vadd.f32 %v1195, %v1227
        %v1244 = vadd.f32 %v1196, %v1228
        %v1245 = vadd.f32 %v1197, %v1229
        %v1246 = vadd.f32 %v1198, %v1230
        %v1247 = vadd.f32 %v1199, %v1231
        %v1248 = vadd.f32 %v1200, %v1232
        %v1249 = vadd.f32 %v1201, %v1233
        %v1250 = vadd.f32 %v1202, %v1234
        %v1251 = vld [vmem:[%s1170 + $0x9] sm:$0xff]
        %v1252 = vld [vmem:[%s1170 + $0x11] sm:$0xff]
        %v1253 = vld [vmem:[%s1170 + $0x29] sm:$0xff]
        %v1254 = vld [vmem:[%s1170 + $0x31] sm:$0xff]
        %v1255 = vld [vmem:[%s1170 + $0x49] sm:$0xff]
        %v1256 = vld [vmem:[%s1170 + $0x51] sm:$0xff]
        %v1257 = vld [vmem:[%s1170 + $0x69] sm:$0xff]
        %v1258 = vld [vmem:[%s1170 + $0x71] sm:$0xff]
        %v1259 = vld [vmem:[%s1170 + $0x89] sm:$0xff]
        %v1260 = vld [vmem:[%s1170 + $0x91] sm:$0xff]
        %v1261 = vld [vmem:[%s1170 + $0xa9] sm:$0xff]
        %v1262 = vld [vmem:[%s1170 + $0xb1] sm:$0xff]
        %v1263 = vld [vmem:[%s1170 + $0xc9] sm:$0xff]
        %v1264 = vld [vmem:[%s1170 + $0xd1] sm:$0xff]
        %v1265 = vld [vmem:[%s1170 + $0xe9] sm:$0xff]
        %v1266 = vld [vmem:[%s1170 + $0xf1] sm:$0xff]
        %v1267 = vmul.f32 %v1251, %v808
        %v1268 = vmul.f32 %v1252, %v808
        %v1269 = vmul.f32 %v1253, %v808
        %v1270 = vmul.f32 %v1254, %v808
        %v1271 = vmul.f32 %v1255, %v808
        %v1272 = vmul.f32 %v1256, %v808
        %v1273 = vmul.f32 %v1257, %v808
        %v1274 = vmul.f32 %v1258, %v808
        %v1275 = vmul.f32 %v1259, %v808
        %v1276 = vmul.f32 %v1260, %v808
        %v1277 = vmul.f32 %v1261, %v808
        %v1278 = vmul.f32 %v1262, %v808
        %v1279 = vmul.f32 %v1263, %v808
        %v1280 = vmul.f32 %v1264, %v808
        %v1281 = vmul.f32 %v1265, %v808
        %v1282 = vmul.f32 %v1266, %v808
        %v1283 = vadd.f32 %v1235, %v1267
        %v1284 = vadd.f32 %v1236, %v1268
        %v1285 = vadd.f32 %v1237, %v1269
        %v1286 = vadd.f32 %v1238, %v1270
        %v1287 = vadd.f32 %v1239, %v1271
        %v1288 = vadd.f32 %v1240, %v1272
        %v1289 = vadd.f32 %v1241, %v1273
        %v1290 = vadd.f32 %v1242, %v1274
        %v1291 = vadd.f32 %v1243, %v1275
        %v1292 = vadd.f32 %v1244, %v1276
        %v1293 = vadd.f32 %v1245, %v1277
        %v1294 = vadd.f32 %v1246, %v1278
        %v1295 = vadd.f32 %v1247, %v1279
        %v1296 = vadd.f32 %v1248, %v1280
        %v1297 = vadd.f32 %v1249, %v1281
        %v1298 = vadd.f32 %v1250, %v1282
        %s1299 = scalar_lea.vmem [#allocation2], 288
        %v1300 = vld [vmem:[%s1299 + $0x7] sm:$0xff]
        %v1301 = vld [vmem:[%s1299 + $0xf] sm:$0xff]
        %v1302 = vld [vmem:[%s1299 + $0x27] sm:$0xff]
        %v1303 = vld [vmem:[%s1299 + $0x2f] sm:$0xff]
        %v1304 = vld [vmem:[%s1299 + $0x47] sm:$0xff]
        %v1305 = vld [vmem:[%s1299 + $0x4f] sm:$0xff]
        %v1306 = vld [vmem:[%s1299 + $0x67] sm:$0xff]
        %v1307 = vld [vmem:[%s1299 + $0x6f] sm:$0xff]
        %v1308 = vld [vmem:[%s1299 + $0x87] sm:$0xff]
        %v1309 = vld [vmem:[%s1299 + $0x8f] sm:$0xff]
        %v1310 = vld [vmem:[%s1299 + $0xa7] sm:$0xff]
        %v1311 = vld [vmem:[%s1299 + $0xaf] sm:$0xff]
        %v1312 = vld [vmem:[%s1299 + $0xc7] sm:$0xff]
        %v1313 = vld [vmem:[%s1299 + $0xcf] sm:$0xff]
        %v1314 = vld [vmem:[%s1299 + $0xe7] sm:$0xff]
        %v1315 = vld [vmem:[%s1299 + $0xef] sm:$0xff]
        %v1316 = vmul.f32 %v1300, %v860
        %v1317 = vmul.f32 %v1301, %v860
        %v1318 = vmul.f32 %v1302, %v860
        %v1319 = vmul.f32 %v1303, %v860
        %v1320 = vmul.f32 %v1304, %v860
        %v1321 = vmul.f32 %v1305, %v860
        %v1322 = vmul.f32 %v1306, %v860
        %v1323 = vmul.f32 %v1307, %v860
        %v1324 = vmul.f32 %v1308, %v860
        %v1325 = vmul.f32 %v1309, %v860
        %v1326 = vmul.f32 %v1310, %v860
        %v1327 = vmul.f32 %v1311, %v860
        %v1328 = vmul.f32 %v1312, %v860
        %v1329 = vmul.f32 %v1313, %v860
        %v1330 = vmul.f32 %v1314, %v860
        %v1331 = vmul.f32 %v1315, %v860
        %v1332 = vadd.f32 %v1283, %v1316
        %v1333 = vadd.f32 %v1284, %v1317
        %v1334 = vadd.f32 %v1285, %v1318
        %v1335 = vadd.f32 %v1286, %v1319
        %v1336 = vadd.f32 %v1287, %v1320
        %v1337 = vadd.f32 %v1288, %v1321
        %v1338 = vadd.f32 %v1289, %v1322
        %v1339 = vadd.f32 %v1290, %v1323
        %v1340 = vadd.f32 %v1291, %v1324
        %v1341 = vadd.f32 %v1292, %v1325
        %v1342 = vadd.f32 %v1293, %v1326
        %v1343 = vadd.f32 %v1294, %v1327
        %v1344 = vadd.f32 %v1295, %v1328
        %v1345 = vadd.f32 %v1296, %v1329
        %v1346 = vadd.f32 %v1297, %v1330
        %v1347 = vadd.f32 %v1298, %v1331
        %v1348 = vld [vmem:[%s1299 + $0x8] sm:$0xff]
        %v1349 = vld [vmem:[%s1299 + $0x10] sm:$0xff]
        %v1350 = vld [vmem:[%s1299 + $0x28] sm:$0xff]
        %v1351 = vld [vmem:[%s1299 + $0x30] sm:$0xff]
        %v1352 = vld [vmem:[%s1299 + $0x48] sm:$0xff]
        %v1353 = vld [vmem:[%s1299 + $0x50] sm:$0xff]
        %v1354 = vld [vmem:[%s1299 + $0x68] sm:$0xff]
        %v1355 = vld [vmem:[%s1299 + $0x70] sm:$0xff]
        %v1356 = vld [vmem:[%s1299 + $0x88] sm:$0xff]
        %v1357 = vld [vmem:[%s1299 + $0x90] sm:$0xff]
        %v1358 = vld [vmem:[%s1299 + $0xa8] sm:$0xff]
        %v1359 = vld [vmem:[%s1299 + $0xb0] sm:$0xff]
        %v1360 = vld [vmem:[%s1299 + $0xc8] sm:$0xff]
        %v1361 = vld [vmem:[%s1299 + $0xd0] sm:$0xff]
        %v1362 = vld [vmem:[%s1299 + $0xe8] sm:$0xff]
        %v1363 = vld [vmem:[%s1299 + $0xf0] sm:$0xff]
        %v1364 = vmul.f32 %v1348, %v912
        %v1365 = vmul.f32 %v1349, %v912
        %v1366 = vmul.f32 %v1350, %v912
        %v1367 = vmul.f32 %v1351, %v912
        %v1368 = vmul.f32 %v1352, %v912
        %v1369 = vmul.f32 %v1353, %v912
        %v1370 = vmul.f32 %v1354, %v912
        %v1371 = vmul.f32 %v1355, %v912
        %v1372 = vmul.f32 %v1356, %v912
        %v1373 = vmul.f32 %v1357, %v912
        %v1374 = vmul.f32 %v1358, %v912
        %v1375 = vmul.f32 %v1359, %v912
        %v1376 = vmul.f32 %v1360, %v912
        %v1377 = vmul.f32 %v1361, %v912
        %v1378 = vmul.f32 %v1362, %v912
        %v1379 = vmul.f32 %v1363, %v912
        %v1380 = vadd.f32 %v1332, %v1364
        %v1381 = vadd.f32 %v1333, %v1365
        %v1382 = vadd.f32 %v1334, %v1366
        %v1383 = vadd.f32 %v1335, %v1367
        %v1384 = vadd.f32 %v1336, %v1368
        %v1385 = vadd.f32 %v1337, %v1369
        %v1386 = vadd.f32 %v1338, %v1370
        %v1387 = vadd.f32 %v1339, %v1371
        %v1388 = vadd.f32 %v1340, %v1372
        %v1389 = vadd.f32 %v1341, %v1373
        %v1390 = vadd.f32 %v1342, %v1374
        %v1391 = vadd.f32 %v1343, %v1375
        %v1392 = vadd.f32 %v1344, %v1376
        %v1393 = vadd.f32 %v1345, %v1377
        %v1394 = vadd.f32 %v1346, %v1378
        %v1395 = vadd.f32 %v1347, %v1379
        %v1396 = vld [vmem:[%s1299 + $0x9] sm:$0xff]
        %v1397 = vld [vmem:[%s1299 + $0x11] sm:$0xff]
        %v1398 = vld [vmem:[%s1299 + $0x29] sm:$0xff]
        %v1399 = vld [vmem:[%s1299 + $0x31] sm:$0xff]
        %v1400 = vld [vmem:[%s1299 + $0x49] sm:$0xff]
        %v1401 = vld [vmem:[%s1299 + $0x51] sm:$0xff]
        %v1402 = vld [vmem:[%s1299 + $0x69] sm:$0xff]
        %v1403 = vld [vmem:[%s1299 + $0x71] sm:$0xff]
        %v1404 = vld [vmem:[%s1299 + $0x89] sm:$0xff]
        %v1405 = vld [vmem:[%s1299 + $0x91] sm:$0xff]
        %v1406 = vld [vmem:[%s1299 + $0xa9] sm:$0xff]
        %v1407 = vld [vmem:[%s1299 + $0xb1] sm:$0xff]
        %v1408 = vld [vmem:[%s1299 + $0xc9] sm:$0xff]
        %v1409 = vld [vmem:[%s1299 + $0xd1] sm:$0xff]
        %v1410 = vld [vmem:[%s1299 + $0xe9] sm:$0xff]
        %v1411 = vld [vmem:[%s1299 + $0xf1] sm:$0xff]
        %v1412 = vmul.f32 %v1396, %v964
        %v1413 = vmul.f32 %v1397, %v964
        %v1414 = vmul.f32 %v1398, %v964
        %v1415 = vmul.f32 %v1399, %v964
        %v1416 = vmul.f32 %v1400, %v964
        %v1417 = vmul.f32 %v1401, %v964
        %v1418 = vmul.f32 %v1402, %v964
        %v1419 = vmul.f32 %v1403, %v964
        %v1420 = vmul.f32 %v1404, %v964
        %v1421 = vmul.f32 %v1405, %v964
        %v1422 = vmul.f32 %v1406, %v964
        %v1423 = vmul.f32 %v1407, %v964
        %v1424 = vmul.f32 %v1408, %v964
        %v1425 = vmul.f32 %v1409, %v964
        %v1426 = vmul.f32 %v1410, %v964
        %v1427 = vmul.f32 %v1411, %v964
        %v1428 = vadd.f32 %v1380, %v1412
        %v1429 = vadd.f32 %v1381, %v1413
        %v1430 = vadd.f32 %v1382, %v1414
        %v1431 = vadd.f32 %v1383, %v1415
        %v1432 = vadd.f32 %v1384, %v1416
        %v1433 = vadd.f32 %v1385, %v1417
        %v1434 = vadd.f32 %v1386, %v1418
        %v1435 = vadd.f32 %v1387, %v1419
        %v1436 = vadd.f32 %v1388, %v1420
        %v1437 = vadd.f32 %v1389, %v1421
        %v1438 = vadd.f32 %v1390, %v1422
        %v1439 = vadd.f32 %v1391, %v1423
        %v1440 = vadd.f32 %v1392, %v1424
        %v1441 = vadd.f32 %v1393, %v1425
        %v1442 = vadd.f32 %v1394, %v1426
        %v1443 = vadd.f32 %v1395, %v1427
        %s1444 = scalar_lea.vmem [#allocation2], 320
        %v1445 = vld [vmem:[%s1444 + $0x7] sm:$0xff]
        %v1446 = vld [vmem:[%s1444 + $0xf] sm:$0xff]
        %v1447 = vld [vmem:[%s1444 + $0x27] sm:$0xff]
        %v1448 = vld [vmem:[%s1444 + $0x2f] sm:$0xff]
        %v1449 = vld [vmem:[%s1444 + $0x47] sm:$0xff]
        %v1450 = vld [vmem:[%s1444 + $0x4f] sm:$0xff]
        %v1451 = vld [vmem:[%s1444 + $0x67] sm:$0xff]
        %v1452 = vld [vmem:[%s1444 + $0x6f] sm:$0xff]
        %v1453 = vld [vmem:[%s1444 + $0x87] sm:$0xff]
        %v1454 = vld [vmem:[%s1444 + $0x8f] sm:$0xff]
        %v1455 = vld [vmem:[%s1444 + $0xa7] sm:$0xff]
        %v1456 = vld [vmem:[%s1444 + $0xaf] sm:$0xff]
        %v1457 = vld [vmem:[%s1444 + $0xc7] sm:$0xff]
        %v1458 = vld [vmem:[%s1444 + $0xcf] sm:$0xff]
        %v1459 = vld [vmem:[%s1444 + $0xe7] sm:$0xff]
        %v1460 = vld [vmem:[%s1444 + $0xef] sm:$0xff]
        %v1461 = vmul.f32 %v1445, %v1017
        %v1462 = vmul.f32 %v1446, %v1017
        %v1463 = vmul.f32 %v1447, %v1017
        %v1464 = vmul.f32 %v1448, %v1017
        %v1465 = vmul.f32 %v1449, %v1017
        %v1466 = vmul.f32 %v1450, %v1017
        %v1467 = vmul.f32 %v1451, %v1017
        %v1468 = vmul.f32 %v1452, %v1017
        %v1469 = vmul.f32 %v1453, %v1017
        %v1470 = vmul.f32 %v1454, %v1017
        %v1471 = vmul.f32 %v1455, %v1017
        %v1472 = vmul.f32 %v1456, %v1017
        %v1473 = vmul.f32 %v1457, %v1017
        %v1474 = vmul.f32 %v1458, %v1017
        %v1475 = vmul.f32 %v1459, %v1017
        %v1476 = vmul.f32 %v1460, %v1017
        %v1477 = vadd.f32 %v1428, %v1461
        %v1478 = vadd.f32 %v1429, %v1462
        %v1479 = vadd.f32 %v1430, %v1463
        %v1480 = vadd.f32 %v1431, %v1464
        %v1481 = vadd.f32 %v1432, %v1465
        %v1482 = vadd.f32 %v1433, %v1466
        %v1483 = vadd.f32 %v1434, %v1467
        %v1484 = vadd.f32 %v1435, %v1468
        %v1485 = vadd.f32 %v1436, %v1469
        %v1486 = vadd.f32 %v1437, %v1470
        %v1487 = vadd.f32 %v1438, %v1471
        %v1488 = vadd.f32 %v1439, %v1472
        %v1489 = vadd.f32 %v1440, %v1473
        %v1490 = vadd.f32 %v1441, %v1474
        %v1491 = vadd.f32 %v1442, %v1475
        %v1492 = vadd.f32 %v1443, %v1476
        %v1493 = vld [vmem:[%s1444 + $0x8] sm:$0xff]
        %v1494 = vld [vmem:[%s1444 + $0x10] sm:$0xff]
        %v1495 = vld [vmem:[%s1444 + $0x28] sm:$0xff]
        %v1496 = vld [vmem:[%s1444 + $0x30] sm:$0xff]
        %v1497 = vld [vmem:[%s1444 + $0x48] sm:$0xff]
        %v1498 = vld [vmem:[%s1444 + $0x50] sm:$0xff]
        %v1499 = vld [vmem:[%s1444 + $0x68] sm:$0xff]
        %v1500 = vld [vmem:[%s1444 + $0x70] sm:$0xff]
        %v1501 = vld [vmem:[%s1444 + $0x88] sm:$0xff]
        %v1502 = vld [vmem:[%s1444 + $0x90] sm:$0xff]
        %v1503 = vld [vmem:[%s1444 + $0xa8] sm:$0xff]
        %v1504 = vld [vmem:[%s1444 + $0xb0] sm:$0xff]
        %v1505 = vld [vmem:[%s1444 + $0xc8] sm:$0xff]
        %v1506 = vld [vmem:[%s1444 + $0xd0] sm:$0xff]
        %v1507 = vld [vmem:[%s1444 + $0xe8] sm:$0xff]
        %v1508 = vld [vmem:[%s1444 + $0xf0] sm:$0xff]
        %v1509 = vmul.f32 %v1493, %v1069
        %v1510 = vmul.f32 %v1494, %v1069
        %v1511 = vmul.f32 %v1495, %v1069
        %v1512 = vmul.f32 %v1496, %v1069
        %v1513 = vmul.f32 %v1497, %v1069
        %v1514 = vmul.f32 %v1498, %v1069
        %v1515 = vmul.f32 %v1499, %v1069
        %v1516 = vmul.f32 %v1500, %v1069
        %v1517 = vmul.f32 %v1501, %v1069
        %v1518 = vmul.f32 %v1502, %v1069
        %v1519 = vmul.f32 %v1503, %v1069
        %v1520 = vmul.f32 %v1504, %v1069
        %v1521 = vmul.f32 %v1505, %v1069
        %v1522 = vmul.f32 %v1506, %v1069
        %v1523 = vmul.f32 %v1507, %v1069
        %v1524 = vmul.f32 %v1508, %v1069
        %v1525 = vadd.f32 %v1477, %v1509
        %v1526 = vadd.f32 %v1478, %v1510
        %v1527 = vadd.f32 %v1479, %v1511
        %v1528 = vadd.f32 %v1480, %v1512
        %v1529 = vadd.f32 %v1481, %v1513
        %v1530 = vadd.f32 %v1482, %v1514
        %v1531 = vadd.f32 %v1483, %v1515
        %v1532 = vadd.f32 %v1484, %v1516
        %v1533 = vadd.f32 %v1485, %v1517
        %v1534 = vadd.f32 %v1486, %v1518
        %v1535 = vadd.f32 %v1487, %v1519
        %v1536 = vadd.f32 %v1488, %v1520
        %v1537 = vadd.f32 %v1489, %v1521
        %v1538 = vadd.f32 %v1490, %v1522
        %v1539 = vadd.f32 %v1491, %v1523
        %v1540 = vadd.f32 %v1492, %v1524
        %v1541 = vld [vmem:[%s1444 + $0x9] sm:$0xff]
        %v1542 = vld [vmem:[%s1444 + $0x11] sm:$0xff]
        %v1543 = vld [vmem:[%s1444 + $0x29] sm:$0xff]
        %v1544 = vld [vmem:[%s1444 + $0x31] sm:$0xff]
        %v1545 = vld [vmem:[%s1444 + $0x49] sm:$0xff]
        %v1546 = vld [vmem:[%s1444 + $0x51] sm:$0xff]
        %v1547 = vld [vmem:[%s1444 + $0x69] sm:$0xff]
        %v1548 = vld [vmem:[%s1444 + $0x71] sm:$0xff]
        %v1549 = vld [vmem:[%s1444 + $0x89] sm:$0xff]
        %v1550 = vld [vmem:[%s1444 + $0x91] sm:$0xff]
        %v1551 = vld [vmem:[%s1444 + $0xa9] sm:$0xff]
        %v1552 = vld [vmem:[%s1444 + $0xb1] sm:$0xff]
        %v1553 = vld [vmem:[%s1444 + $0xc9] sm:$0xff]
        %v1554 = vld [vmem:[%s1444 + $0xd1] sm:$0xff]
        %v1555 = vld [vmem:[%s1444 + $0xe9] sm:$0xff]
        %v1556 = vld [vmem:[%s1444 + $0xf1] sm:$0xff]
        %v1557 = vmul.f32 %v1541, %v1121
        %v1558 = vmul.f32 %v1542, %v1121
        %v1559 = vmul.f32 %v1543, %v1121
        %v1560 = vmul.f32 %v1544, %v1121
        %v1561 = vmul.f32 %v1545, %v1121
        %v1562 = vmul.f32 %v1546, %v1121
        %v1563 = vmul.f32 %v1547, %v1121
        %v1564 = vmul.f32 %v1548, %v1121
        %v1565 = vmul.f32 %v1549, %v1121
        %v1566 = vmul.f32 %v1550, %v1121
        %v1567 = vmul.f32 %v1551, %v1121
        %v1568 = vmul.f32 %v1552, %v1121
        %v1569 = vmul.f32 %v1553, %v1121
        %v1570 = vmul.f32 %v1554, %v1121
        %v1571 = vmul.f32 %v1555, %v1121
        %v1572 = vmul.f32 %v1556, %v1121
        %v1573 = vadd.f32 %v1525, %v1557
        %v1574 = vadd.f32 %v1526, %v1558
        %v1575 = vadd.f32 %v1527, %v1559
        %v1576 = vadd.f32 %v1528, %v1560
        %v1577 = vadd.f32 %v1529, %v1561
        %v1578 = vadd.f32 %v1530, %v1562
        %v1579 = vadd.f32 %v1531, %v1563
        %v1580 = vadd.f32 %v1532, %v1564
        %v1581 = vadd.f32 %v1533, %v1565
        %v1582 = vadd.f32 %v1534, %v1566
        %v1583 = vadd.f32 %v1535, %v1567
        %v1584 = vadd.f32 %v1536, %v1568
        %v1585 = vadd.f32 %v1537, %v1569
        %v1586 = vadd.f32 %v1538, %v1570
        %v1587 = vadd.f32 %v1539, %v1571
        %v1588 = vadd.f32 %v1540, %v1572
        %s1589 = scalar_lea.vmem [#allocation3], 128
        %1590 = vst [vmem:[%s1589] sm:$0xff] %v1573
        %1591 = vst [vmem:[%s1589 + $0x8] sm:$0xff] %v1574
        %1592 = vst [vmem:[%s1589 + $0x10] sm:$0xff] %v1575
        %1593 = vst [vmem:[%s1589 + $0x18] sm:$0xff] %v1576
        %1594 = vst [vmem:[%s1589 + $0x20] sm:$0xff] %v1577
        %1595 = vst [vmem:[%s1589 + $0x28] sm:$0xff] %v1578
        %1596 = vst [vmem:[%s1589 + $0x30] sm:$0xff] %v1579
        %1597 = vst [vmem:[%s1589 + $0x38] sm:$0xff] %v1580
        %1598 = vst [vmem:[%s1589 + $0x40] sm:$0xff] %v1581
        %1599 = vst [vmem:[%s1589 + $0x48] sm:$0xff] %v1582
        %1600 = vst [vmem:[%s1589 + $0x50] sm:$0xff] %v1583
        %1601 = vst [vmem:[%s1589 + $0x58] sm:$0xff] %v1584
        %1602 = vst [vmem:[%s1589 + $0x60] sm:$0xff] %v1585
        %1603 = vst [vmem:[%s1589 + $0x68] sm:$0xff] %v1586
        %1604 = vst [vmem:[%s1589 + $0x70] sm:$0xff] %v1587
        %1605 = vst [vmem:[%s1589 + $0x78] sm:$0xff] %v1588
        %v1606 = vld [vmem:[#allocation10] sm:$0xf]
        %v1607 = vld [vmem:[#allocation10 + $0x4] sm:$0xf]
        %v1608 = vld [vmem:[#allocation10 + $0x8] sm:$0xf]
        %v1609 = vld [vmem:[#allocation10 + $0xc] sm:$0xf]
        %v1610 = vld [vmem:[#allocation10 + $0x10] sm:$0xf]
        %v1611 = vld [vmem:[#allocation10 + $0x14] sm:$0xf]
        %v1612 = vld [vmem:[#allocation10 + $0x18] sm:$0xf]
        %v1613 = vld [vmem:[#allocation10 + $0x1c] sm:$0xf]
        %v1614 = vld [vmem:[#allocation10 + $0x20] sm:$0xf]
        %v1615 = vld [vmem:[#allocation10 + $0x24] sm:$0xf]
        %v1616 = vld [vmem:[#allocation10 + $0x28] sm:$0xf]
        %v1617 = vld [vmem:[#allocation10 + $0x2c] sm:$0xf]
        %v1618 = vld [vmem:[#allocation10 + $0x30] sm:$0xf]
        %v1619 = vld [vmem:[#allocation10 + $0x34] sm:$0xf]
        %v1620 = vld [vmem:[#allocation10 + $0x38] sm:$0xf]
        %v1621 = vld [vmem:[#allocation10 + $0x3c] sm:$0xf]
        %v1622 = vld [vmem:[%s5] sm:$0x1]
        %v1623 = vld [vmem:[#allocation3] sm:$0xff]
        %v1624 = vld [vmem:[#allocation3 + $0x8] sm:$0xff]
        %v1625 = vld [vmem:[#allocation3 + $0x10] sm:$0xff]
        %v1626 = vld [vmem:[#allocation3 + $0x18] sm:$0xff]
        %v1627 = vld [vmem:[#allocation3 + $0x20] sm:$0xff]
        %v1628 = vld [vmem:[#allocation3 + $0x28] sm:$0xff]
        %v1629 = vld [vmem:[#allocation3 + $0x30] sm:$0xff]
        %v1630 = vld [vmem:[#allocation3 + $0x38] sm:$0xff]
        %v1631 = vld [vmem:[#allocation3 + $0x40] sm:$0xff]
        %v1632 = vld [vmem:[#allocation3 + $0x48] sm:$0xff]
        %v1633 = vld [vmem:[#allocation3 + $0x50] sm:$0xff]
        %v1634 = vld [vmem:[#allocation3 + $0x58] sm:$0xff]
        %v1635 = vld [vmem:[#allocation3 + $0x60] sm:$0xff]
        %v1636 = vld [vmem:[#allocation3 + $0x68] sm:$0xff]
        %v1637 = vld [vmem:[#allocation3 + $0x70] sm:$0xff]
        %v1638 = vld [vmem:[#allocation3 + $0x78] sm:$0xff]
        %v1639 = vld [vmem:[#allocation3 + $0x80] sm:$0xff]
        %v1640 = vld [vmem:[#allocation3 + $0x88] sm:$0xff]
        %v1641 = vld [vmem:[#allocation3 + $0x90] sm:$0xff]
        %v1642 = vld [vmem:[#allocation3 + $0x98] sm:$0xff]
        %v1643 = vld [vmem:[#allocation3 + $0xa0] sm:$0xff]
        %v1644 = vld [vmem:[#allocation3 + $0xa8] sm:$0xff]
        %v1645 = vld [vmem:[#allocation3 + $0xb0] sm:$0xff]
        %v1646 = vld [vmem:[#allocation3 + $0xb8] sm:$0xff]
        %v1647 = vld [vmem:[#allocation3 + $0xc0] sm:$0xff]
        %v1648 = vld [vmem:[#allocation3 + $0xc8] sm:$0xff]
        %v1649 = vld [vmem:[#allocation3 + $0xd0] sm:$0xff]
        %v1650 = vld [vmem:[#allocation3 + $0xd8] sm:$0xff]
        %v1651 = vld [vmem:[#allocation3 + $0xe0] sm:$0xff]
        %v1652 = vld [vmem:[#allocation3 + $0xe8] sm:$0xff]
        %v1653 = vld [vmem:[#allocation3 + $0xf0] sm:$0xff]
        %v1654 = vld [vmem:[#allocation3 + $0xf8] sm:$0xff]
        %v1655 = vpack.c.bf16 %v1624, %v1623
        %v1656 = vpack.c.bf16 %v1626, %v1625
        %v1657 = vpack.c.bf16 %v1628, %v1627
        %v1658 = vpack.c.bf16 %v1630, %v1629
        %v1659 = vpack.c.bf16 %v1632, %v1631
        %v1660 = vpack.c.bf16 %v1634, %v1633
        %v1661 = vpack.c.bf16 %v1636, %v1635
        %v1662 = vpack.c.bf16 %v1638, %v1637
        %v1663 = vpack.c.bf16 %v1640, %v1639
        %v1664 = vpack.c.bf16 %v1642, %v1641
        %v1665 = vpack.c.bf16 %v1644, %v1643
        %v1666 = vpack.c.bf16 %v1646, %v1645
        %v1667 = vpack.c.bf16 %v1648, %v1647
        %v1668 = vpack.c.bf16 %v1650, %v1649
        %v1669 = vpack.c.bf16 %v1652, %v1651
        %v1670 = vpack.c.bf16 %v1654, %v1653
        %v1672 = vlaneseq
        %v1673 = vshrl.u32 %v1672, 7
        %v1674 = vsub.s32 0, %v1673
        %v1675 = vrot.slane %v1622, %v1674
        %v1693 = vunpack.c.l.b16 %v1606
        %v1694 = vunpack.c.l.b16 %v1607
        %v1695 = vunpack.c.l.b16 %v1608
        %v1696 = vunpack.c.l.b16 %v1609
        %v1697 = vunpack.c.l.b16 %v1610
        %v1698 = vunpack.c.l.b16 %v1611
        %v1699 = vunpack.c.l.b16 %v1612
        %v1700 = vunpack.c.l.b16 %v1613
        %v1701 = vunpack.c.l.b16 %v1614
        %v1702 = vunpack.c.l.b16 %v1615
        %v1703 = vunpack.c.l.b16 %v1616
        %v1704 = vunpack.c.l.b16 %v1617
        %v1705 = vunpack.c.l.b16 %v1618
        %v1706 = vunpack.c.l.b16 %v1619
        %v1707 = vunpack.c.l.b16 %v1620
        %v1708 = vunpack.c.l.b16 %v1621
        %v1709 = vpack.c.b16 %v1694, %v1693
        %v1710 = vpack.c.b16 %v1696, %v1695
        %v1711 = vpack.c.b16 %v1698, %v1697
        %v1712 = vpack.c.b16 %v1700, %v1699
        %v1713 = vpack.c.b16 %v1702, %v1701
        %v1714 = vpack.c.b16 %v1704, %v1703
        %v1715 = vpack.c.b16 %v1706, %v1705
        %v1716 = vpack.c.b16 %v1708, %v1707
        %1725 = vmatprep.subr.bf16.mxu0 0
        %1726 = vmatpush1.bf16.msra.mxu0 %v1709
        %1727 = vmatprep.subr.bf16.mxu0 0
        %1728 = vmatpush1.bf16.msra.mxu0 %v1710
        %1729 = vmatprep.subr.bf16.mxu0 0
        %1730 = vmatpush1.bf16.msra.mxu0 %v1711
        %1731 = vmatprep.subr.bf16.mxu0 0
        %1732 = vmatpush1.bf16.msra.mxu0 %v1712
        %1733 = vmatprep.subr.bf16.mxu0 0
        %1734 = vmatpush1.bf16.msra.mxu0 %v1713
        %1735 = vmatprep.subr.bf16.mxu0 0
        %1736 = vmatpush1.bf16.msra.mxu0 %v1714
        %1737 = vmatprep.subr.bf16.mxu0 0
        %1738 = vmatpush1.bf16.msra.mxu0 %v1715
        %1739 = vmatprep.subr.bf16.mxu0 0
        %1740 = vmatpush1.bf16.msra.mxu0 %v1716
        %1741 = vmatprep.subr.bf16.mxu0 0
        %1742 = vmatpush1.bf16.msra.mxu0 0
        %1743 = vmatprep.subr.bf16.mxu0 0
        %1744 = vmatpush1.bf16.msra.mxu0 0
        %1745 = vmatprep.subr.bf16.mxu0 0
        %1746 = vmatpush1.bf16.msra.mxu0 0
        %1747 = vmatprep.subr.bf16.mxu0 0
        %1748 = vmatpush1.bf16.msra.mxu0 0
        %1749 = vmatprep.subr.bf16.mxu0 0
        %1750 = vmatpush1.bf16.msra.mxu0 0
        %1751 = vmatprep.subr.bf16.mxu0 0
        %1752 = vmatpush1.bf16.msra.mxu0 0
        %1753 = vmatprep.subr.bf16.mxu0 0
        %1754 = vmatpush1.bf16.msra.mxu0 0
        %1755 = vmatprep.subr.bf16.mxu0 0
        %1756 = vmatpush1.bf16.msra.mxu0 0
        %1757 = vmatprep.mubr.bf16.mxu0 0
        %1758 = vmatmul.mubr.bf16.gmra.mrb[0].mxu0 %v1655
        %v1759 = vpop.f32.mrb[0].mxu0
        %v1760 = vadd.f32 %v1675, %v1759
        %v1761 = vpop.f32.mrb[0].mxu0
        %v1762 = vpop.f32.mrb[0].mxu0
        %v1763 = vadd.f32 %v1675, %v1762
        %v1764 = vpop.f32.mrb[0].mxu0
        %1765 = vmatprep.mubr.bf16.mxu0 0
        %1766 = vmatmul.mubr.bf16.gmra.mrb[0].mxu0 %v1656
        %v1767 = vpop.f32.mrb[0].mxu0
        %v1768 = vadd.f32 %v1675, %v1767
        %v1769 = vpop.f32.mrb[0].mxu0
        %v1770 = vpop.f32.mrb[0].mxu0
        %v1771 = vadd.f32 %v1675, %v1770
        %v1772 = vpop.f32.mrb[0].mxu0
        %1773 = vmatprep.mubr.bf16.mxu0 0
        %1774 = vmatmul.mubr.bf16.gmra.mrb[0].mxu0 %v1657
        %v1775 = vpop.f32.mrb[0].mxu0
        %v1776 = vadd.f32 %v1675, %v1775
        %v1777 = vpop.f32.mrb[0].mxu0
        %v1778 = vpop.f32.mrb[0].mxu0
        %v1779 = vadd.f32 %v1675, %v1778
        %v1780 = vpop.f32.mrb[0].mxu0
        %1781 = vmatprep.mubr.bf16.mxu0 0
        %1782 = vmatmul.mubr.bf16.gmra.mrb[0].mxu0 %v1658
        %v1783 = vpop.f32.mrb[0].mxu0
        %v1784 = vadd.f32 %v1675, %v1783
        %v1785 = vpop.f32.mrb[0].mxu0
        %v1786 = vpop.f32.mrb[0].mxu0
        %v1787 = vadd.f32 %v1675, %v1786
        %v1788 = vpop.f32.mrb[0].mxu0
        %1789 = vmatprep.mubr.bf16.mxu0 0
        %1790 = vmatmul.mubr.bf16.gmra.mrb[0].mxu0 %v1659
        %v1791 = vpop.f32.mrb[0].mxu0
        %v1792 = vadd.f32 %v1675, %v1791
        %v1793 = vpop.f32.mrb[0].mxu0
        %v1794 = vpop.f32.mrb[0].mxu0
        %v1795 = vadd.f32 %v1675, %v1794
        %v1796 = vpop.f32.mrb[0].mxu0
        %1797 = vmatprep.mubr.bf16.mxu0 0
        %1798 = vmatmul.mubr.bf16.gmra.mrb[0].mxu0 %v1660
        %v1799 = vpop.f32.mrb[0].mxu0
        %v1800 = vadd.f32 %v1675, %v1799
        %v1801 = vpop.f32.mrb[0].mxu0
        %v1802 = vpop.f32.mrb[0].mxu0
        %v1803 = vadd.f32 %v1675, %v1802
        %v1804 = vpop.f32.mrb[0].mxu0
        %1805 = vmatprep.mubr.bf16.mxu0 0
        %1806 = vmatmul.mubr.bf16.gmra.mrb[0].mxu0 %v1661
        %v1807 = vpop.f32.mrb[0].mxu0
        %v1808 = vadd.f32 %v1675, %v1807
        %v1809 = vpop.f32.mrb[0].mxu0
        %v1810 = vpop.f32.mrb[0].mxu0
        %v1811 = vadd.f32 %v1675, %v1810
        %v1812 = vpop.f32.mrb[0].mxu0
        %1813 = vmatprep.mubr.bf16.mxu0 0
        %1814 = vmatmul.mubr.bf16.gmra.mrb[0].mxu0 %v1662
        %v1815 = vpop.f32.mrb[0].mxu0
        %v1816 = vadd.f32 %v1675, %v1815
        %v1817 = vpop.f32.mrb[0].mxu0
        %v1818 = vpop.f32.mrb[0].mxu0
        %v1819 = vadd.f32 %v1675, %v1818
        %v1820 = vpop.f32.mrb[0].mxu0
        %1821 = vmatprep.mubr.bf16.mxu0 0
        %1822 = vmatmul.mubr.bf16.gmra.mrb[0].mxu0 %v1663
        %v1823 = vpop.f32.mrb[0].mxu0
        %v1824 = vadd.f32 %v1675, %v1823
        %v1825 = vpop.f32.mrb[0].mxu0
        %v1826 = vpop.f32.mrb[0].mxu0
        %v1827 = vadd.f32 %v1675, %v1826
        %v1828 = vpop.f32.mrb[0].mxu0
        %1829 = vmatprep.mubr.bf16.mxu0 0
        %1830 = vmatmul.mubr.bf16.gmra.mrb[0].mxu0 %v1664
        %v1831 = vpop.f32.mrb[0].mxu0
        %v1832 = vadd.f32 %v1675, %v1831
        %v1833 = vpop.f32.mrb[0].mxu0
        %v1834 = vpop.f32.mrb[0].mxu0
        %v1835 = vadd.f32 %v1675, %v1834
        %v1836 = vpop.f32.mrb[0].mxu0
        %1837 = vmatprep.mubr.bf16.mxu0 0
        %1838 = vmatmul.mubr.bf16.gmra.mrb[0].mxu0 %v1665
        %v1839 = vpop.f32.mrb[0].mxu0
        %v1840 = vadd.f32 %v1675, %v1839
        %v1841 = vpop.f32.mrb[0].mxu0
        %v1842 = vpop.f32.mrb[0].mxu0
        %v1843 = vadd.f32 %v1675, %v1842
        %v1844 = vpop.f32.mrb[0].mxu0
        %1845 = vmatprep.mubr.bf16.mxu0 0
        %1846 = vmatmul.mubr.bf16.gmra.mrb[0].mxu0 %v1666
        %v1847 = vpop.f32.mrb[0].mxu0
        %v1848 = vadd.f32 %v1675, %v1847
        %v1849 = vpop.f32.mrb[0].mxu0
        %v1850 = vpop.f32.mrb[0].mxu0
        %v1851 = vadd.f32 %v1675, %v1850
        %v1852 = vpop.f32.mrb[0].mxu0
        %1853 = vmatprep.mubr.bf16.mxu0 0
        %1854 = vmatmul.mubr.bf16.gmra.mrb[0].mxu0 %v1667
        %v1855 = vpop.f32.mrb[0].mxu0
        %v1856 = vadd.f32 %v1675, %v1855
        %v1857 = vpop.f32.mrb[0].mxu0
        %v1858 = vpop.f32.mrb[0].mxu0
        %v1859 = vadd.f32 %v1675, %v1858
        %v1860 = vpop.f32.mrb[0].mxu0
        %1861 = vmatprep.mubr.bf16.mxu0 0
        %1862 = vmatmul.mubr.bf16.gmra.mrb[0].mxu0 %v1668
        %v1863 = vpop.f32.mrb[0].mxu0
        %v1864 = vadd.f32 %v1675, %v1863
        %v1865 = vpop.f32.mrb[0].mxu0
        %v1866 = vpop.f32.mrb[0].mxu0
        %v1867 = vadd.f32 %v1675, %v1866
        %v1868 = vpop.f32.mrb[0].mxu0
        %1869 = vmatprep.mubr.bf16.mxu0 0
        %1870 = vmatmul.mubr.bf16.gmra.mrb[0].mxu0 %v1669
        %v1871 = vpop.f32.mrb[0].mxu0
        %v1872 = vadd.f32 %v1675, %v1871
        %v1873 = vpop.f32.mrb[0].mxu0
        %v1874 = vpop.f32.mrb[0].mxu0
        %v1875 = vadd.f32 %v1675, %v1874
        %v1876 = vpop.f32.mrb[0].mxu0
        %1877 = vmatprep.mubr.bf16.mxu0 0
        %1878 = vmatmul.mubr.bf16.gmra.mrb[0].mxu0 %v1670
        %v1879 = vpop.f32.mrb[0].mxu0
        %v1880 = vadd.f32 %v1675, %v1879
        %v1881 = vpop.f32.mrb[0].mxu0
        %v1882 = vpop.f32.mrb[0].mxu0
        %v1883 = vadd.f32 %v1675, %v1882
        %v1884 = vpop.f32.mrb[0].mxu0
        %1885 = vdwg.mxu0
        %v1886 = vld [vmem:[%s273] sm:$0xff]
        %v1887 = vld [vmem:[%s273 + $0x8] sm:$0xff]
        %v1888 = vld [vmem:[%s273 + $0x10] sm:$0xff]
        %v1889 = vld [vmem:[%s273 + $0x18] sm:$0xff]
        %v1890 = vld [vmem:[%s273 + $0x20] sm:$0xff]
        %v1891 = vld [vmem:[%s273 + $0x28] sm:$0xff]
        %v1892 = vld [vmem:[%s273 + $0x30] sm:$0xff]
        %v1893 = vld [vmem:[%s273 + $0x38] sm:$0xff]
        %v1894 = vld [vmem:[%s273 + $0x40] sm:$0xff]
        %v1895 = vld [vmem:[%s273 + $0x48] sm:$0xff]
        %v1896 = vld [vmem:[%s273 + $0x50] sm:$0xff]
        %v1897 = vld [vmem:[%s273 + $0x58] sm:$0xff]
        %v1898 = vld [vmem:[%s273 + $0x60] sm:$0xff]
        %v1899 = vld [vmem:[%s273 + $0x68] sm:$0xff]
        %v1900 = vld [vmem:[%s273 + $0x70] sm:$0xff]
        %v1901 = vld [vmem:[%s273 + $0x78] sm:$0xff]
        %v1902 = vld [vmem:[%s273 + $0x80] sm:$0xff]
        %v1903 = vld [vmem:[%s273 + $0x88] sm:$0xff]
        %v1904 = vld [vmem:[%s273 + $0x90] sm:$0xff]
        %v1905 = vld [vmem:[%s273 + $0x98] sm:$0xff]
        %v1906 = vld [vmem:[%s273 + $0xa0] sm:$0xff]
        %v1907 = vld [vmem:[%s273 + $0xa8] sm:$0xff]
        %v1908 = vld [vmem:[%s273 + $0xb0] sm:$0xff]
        %v1909 = vld [vmem:[%s273 + $0xb8] sm:$0xff]
        %v1910 = vld [vmem:[%s273 + $0xc0] sm:$0xff]
        %v1911 = vld [vmem:[%s273 + $0xc8] sm:$0xff]
        %v1912 = vld [vmem:[%s273 + $0xd0] sm:$0xff]
        %v1913 = vld [vmem:[%s273 + $0xd8] sm:$0xff]
        %v1914 = vld [vmem:[%s273 + $0xe0] sm:$0xff]
        %v1915 = vld [vmem:[%s273 + $0xe8] sm:$0xff]
        %v1916 = vld [vmem:[%s273 + $0xf0] sm:$0xff]
        %v1917 = vld [vmem:[%s273 + $0xf8] sm:$0xff]
        %v1918 = vadd.f32 %v1886, %v1760
        %v1919 = vadd.f32 %v1887, %v1763
        %v1920 = vadd.f32 %v1888, %v1768
        %v1921 = vadd.f32 %v1889, %v1771
        %v1922 = vadd.f32 %v1890, %v1776
        %v1923 = vadd.f32 %v1891, %v1779
        %v1924 = vadd.f32 %v1892, %v1784
        %v1925 = vadd.f32 %v1893, %v1787
        %v1926 = vadd.f32 %v1894, %v1792
        %v1927 = vadd.f32 %v1895, %v1795
        %v1928 = vadd.f32 %v1896, %v1800
        %v1929 = vadd.f32 %v1897, %v1803
        %v1930 = vadd.f32 %v1898, %v1808
        %v1931 = vadd.f32 %v1899, %v1811
        %v1932 = vadd.f32 %v1900, %v1816
        %v1933 = vadd.f32 %v1901, %v1819
        %v1934 = vadd.f32 %v1902, %v1824
        %v1935 = vadd.f32 %v1903, %v1827
        %v1936 = vadd.f32 %v1904, %v1832
        %v1937 = vadd.f32 %v1905, %v1835
        %v1938 = vadd.f32 %v1906, %v1840
        %v1939 = vadd.f32 %v1907, %v1843
        %v1940 = vadd.f32 %v1908, %v1848
        %v1941 = vadd.f32 %v1909, %v1851
        %v1942 = vadd.f32 %v1910, %v1856
        %v1943 = vadd.f32 %v1911, %v1859
        %v1944 = vadd.f32 %v1912, %v1864
        %v1945 = vadd.f32 %v1913, %v1867
        %v1946 = vadd.f32 %v1914, %v1872
        %v1947 = vadd.f32 %v1915, %v1875
        %v1948 = vadd.f32 %v1916, %v1880
        %v1949 = vadd.f32 %v1917, %v1883
        %v1950 = vmax.f32 %v1918, 0.0
        %v1951 = vmax.f32 %v1919, 0.0
        %v1952 = vmax.f32 %v1920, 0.0
        %v1953 = vmax.f32 %v1921, 0.0
        %v1954 = vmax.f32 %v1922, 0.0
        %v1955 = vmax.f32 %v1923, 0.0
        %v1956 = vmax.f32 %v1924, 0.0
        %v1957 = vmax.f32 %v1925, 0.0
        %v1958 = vmax.f32 %v1926, 0.0
        %v1959 = vmax.f32 %v1927, 0.0
        %v1960 = vmax.f32 %v1928, 0.0
        %v1961 = vmax.f32 %v1929, 0.0
        %v1962 = vmax.f32 %v1930, 0.0
        %v1963 = vmax.f32 %v1931, 0.0
        %v1964 = vmax.f32 %v1932, 0.0
        %v1965 = vmax.f32 %v1933, 0.0
        %v1966 = vmax.f32 %v1934, 0.0
        %v1967 = vmax.f32 %v1935, 0.0
        %v1968 = vmax.f32 %v1936, 0.0
        %v1969 = vmax.f32 %v1937, 0.0
        %v1970 = vmax.f32 %v1938, 0.0
        %v1971 = vmax.f32 %v1939, 0.0
        %v1972 = vmax.f32 %v1940, 0.0
        %v1973 = vmax.f32 %v1941, 0.0
        %v1974 = vmax.f32 %v1942, 0.0
        %v1975 = vmax.f32 %v1943, 0.0
        %v1976 = vmax.f32 %v1944, 0.0
        %v1977 = vmax.f32 %v1945, 0.0
        %v1978 = vmax.f32 %v1946, 0.0
        %v1979 = vmax.f32 %v1947, 0.0
        %v1980 = vmax.f32 %v1948, 0.0
        %v1981 = vmax.f32 %v1949, 0.0
        %1982 = vst [vmem:[%s313] sm:$0xff] %v1950
        %1983 = vst [vmem:[%s313 + $0x8] sm:$0xff] %v1951
        %1984 = vst [vmem:[%s313 + $0x10] sm:$0xff] %v1952
        %1985 = vst [vmem:[%s313 + $0x18] sm:$0xff] %v1953
        %1986 = vst [vmem:[%s313 + $0x20] sm:$0xff] %v1954
        %1987 = vst [vmem:[%s313 + $0x28] sm:$0xff] %v1955
        %1988 = vst [vmem:[%s313 + $0x30] sm:$0xff] %v1956
        %1989 = vst [vmem:[%s313 + $0x38] sm:$0xff] %v1957
        %1990 = vst [vmem:[%s313 + $0x40] sm:$0xff] %v1958
        %1991 = vst [vmem:[%s313 + $0x48] sm:$0xff] %v1959
        %1992 = vst [vmem:[%s313 + $0x50] sm:$0xff] %v1960
        %1993 = vst [vmem:[%s313 + $0x58] sm:$0xff] %v1961
        %1994 = vst [vmem:[%s313 + $0x60] sm:$0xff] %v1962
        %1995 = vst [vmem:[%s313 + $0x68] sm:$0xff] %v1963
        %1996 = vst [vmem:[%s313 + $0x70] sm:$0xff] %v1964
        %1997 = vst [vmem:[%s313 + $0x78] sm:$0xff] %v1965
        %1998 = vst [vmem:[%s313 + $0x80] sm:$0xff] %v1966
        %1999 = vst [vmem:[%s313 + $0x88] sm:$0xff] %v1967
        %2000 = vst [vmem:[%s313 + $0x90] sm:$0xff] %v1968
        %2001 = vst [vmem:[%s313 + $0x98] sm:$0xff] %v1969
        %2002 = vst [vmem:[%s313 + $0xa0] sm:$0xff] %v1970
        %2003 = vst [vmem:[%s313 + $0xa8] sm:$0xff] %v1971
        %2004 = vst [vmem:[%s313 + $0xb0] sm:$0xff] %v1972
        %2005 = vst [vmem:[%s313 + $0xb8] sm:$0xff] %v1973
        %2006 = vst [vmem:[%s313 + $0xc0] sm:$0xff] %v1974
        %2007 = vst [vmem:[%s313 + $0xc8] sm:$0xff] %v1975
        %2008 = vst [vmem:[%s313 + $0xd0] sm:$0xff] %v1976
        %2009 = vst [vmem:[%s313 + $0xd8] sm:$0xff] %v1977
        %2010 = vst [vmem:[%s313 + $0xe0] sm:$0xff] %v1978
        %2011 = vst [vmem:[%s313 + $0xe8] sm:$0xff] %v1979
        %2012 = vst [vmem:[%s313 + $0xf0] sm:$0xff] %v1980
        %2013 = vst [vmem:[%s313 + $0xf8] sm:$0xff] %v1981
        %s2014 = sand.u32 %s164, 1
        %s2015 = scalar_lea.sflag [#allocation6], %s2014
        %s2016 = sand.u32 %s164, 1
        %s2017 = smul.addr %s2016, 256
        %s2018 = scalar_lea.vmem [#allocation12], %s2017
        // Predicated region
        $region61: #{tpu_custom_call.1} parent=43 // pred_check
          %p2019 = pneg %p174
        $region62: #{tpu_custom_call.1} parent=43 // pred_check_branch
          %2021 = sbr.rel (%p2019) target = $region64
        $region63: #{tpu_custom_call.1} parent=43 // pred_region
          %s2023 = ssub.s32 4096, 4096
          %2024 = vsyncadd %s2015, %s2023
          %s2025 = smul.addr %s25, 32
          %s2026 = smul.addr %s2025, 128
          %s2027 = scalar_lea.hbm %s6, %s2026
          %s2028 = sshll.u32 %s2018, 4
          %s2029 = int_to_ptr.vmem [resolvable:$true] %s2028
          %2034 = dma.vmem_to_hbm [thread:$0]  %s2029, 4096, %s2027, %s2015, 128, 128, 8
        $region64: #{tpu_custom_call.1} parent=43 // pred_fallthru
          _
      $region44: #{tpu_custom_call.1} parent=5 // pred_fallthru
        _
      %p2035 = scmp.le.s32.totalorder 2, %s20
      // Predicated region
      $region65: #{tpu_custom_call.1} parent=5 // pred_check
        %p2036 = pneg %p2035
      $region66: #{tpu_custom_call.1} parent=5 // pred_check_branch
        %2038 = sbr.rel (%p2036) target = $region68
      $region67: #{tpu_custom_call.1} parent=5 // pred_region
        %s2039 = ssub.s32 %s20, 2
        // Predicated region
        $region69: #{tpu_custom_call.1} parent=67 // pred_check
          %p2040 = pneg %p180
        $region70: #{tpu_custom_call.1} parent=67 // pred_check_branch
          %2042 = sbr.rel (%p2040) target = $region72
        $region71: #{tpu_custom_call.1} parent=67 // pred_region
          %s2043 = sand.u32 %s165, 1
          %s2044 = scalar_lea.sflag [#allocation6], %s2043
          %s2045 = sand.u32 %s165, 1
          %s2046 = smul.addr %s2045, 256
          %s2047 = scalar_lea.vmem [#allocation12], %s2046
          %2048 = dma.done %s2044, 4096
        $region72: #{tpu_custom_call.1} parent=67 // pred_fallthru
          _
      $region68: #{tpu_custom_call.1} parent=5 // pred_fallthru
        _
    $region6: #{tpu_custom_call.1} parent=1 // loop_footer
      %s24 = sadd.s32 1, %s20
    $region7: #{tpu_custom_call.1} parent=1 // loop_footer_branch
      %19 = sbr.rel target = $region3
    $region8: #{tpu_custom_call.1} parent=1 // loop_exit
      _
    %2049 = vsyncpa [#allocation5], 1
    %s2050 = scalar_lea.sflag [#allocation5], 1
    %2051 = vsyncpa %s2050, 1
    %2052 = vsyncpa [#allocation8], 1
    %2053 = vsyncpa [#allocation11], 1
    %2054 = vsyncpa [#allocation6], 1
    %s2055 = scalar_lea.sflag [#allocation6], 1
    %2056 = vsyncpa %s2055, 1

</llo_original>
